<compile_context>
chip_gen: v7x
topology: tpu7x:2x2x1
jax: 0.10.0
libtpu: 0.0.40
codegen_flags: <defaults>
</compile_context>

<pallas_src>
import math
import functools

import numpy as np
import jax
import jax.numpy as jnp
from jax.experimental import pallas as pl
from jax.experimental.pallas import tpu as pltpu


LANE = 128                      # TPU vreg lane width
_OUT_BLOCK_BUDGET = 8 << 20     # per-step output-block bytes (x2 when double-buffered)
_MIN_BLOCK_BYTES = 1 << 20      # don't shrink per-step DMA below ~1 MiB
_VMEM_LIMIT = 32 << 20          # scoped-VMEM limit safe on v5e / v6e / v7x


def _pos_embed_sine_kernel(xemb_ref, inv_dim_t_ref, aux_ref, pos_ref, *, exact_cos):
    # xemb_ref     : (TB, 1, TL) f32   cumsum'd (+ optionally normalized) positions
    # inv_dim_t_ref: (F, 1)      f32   1 / dim_t
    # aux_ref      : (F, 1)      f32   is_cos (0/1)       when exact_cos=True
    #                                  phase  (0 or pi/2) when exact_cos=False
    # pos_ref      : (TB, F, TL)       output tile (lane-dense)
    arg = xemb_ref[...] * inv_dim_t_ref[...]               # (TB, F, TL) via broadcast
    if exact_cos:
        out = jnp.where(aux_ref[...] > 0.5, jnp.cos(arg), jnp.sin(arg))
    else:
        out = jnp.sin(arg + aux_ref[...])                  # cos(x) == sin(x + pi/2)
    pos_ref[...] = out.astype(pos_ref.dtype)


def _round_up(x, m):
    return ((x + m - 1) // m) * m


def _choose_l_tile(L, F, elem_bytes):
    """Returns (TL, L_pad, needs_slice)."""
    cap = (_OUT_BLOCK_BUDGET // (F * elem_bytes)) // LANE * LANE
    cap = max(cap, LANE)
    if L % LANE == 0:
        # largest lane-multiple divisor of L that fits the VMEM budget
        cap = min(cap, L)
        TL, t = LANE, cap
        while t >= LANE:
            if L % t == 0:
                TL = t
                break
            t -= LANE
        return TL, L, False
    if F * L * elem_bytes <= _OUT_BLOCK_BUDGET:
        # unaligned but small enough: one full-extent block along L
        # -> no padding, no post-kernel slice copy.
        return L, L, False
    # unaligned and large: pad up to a multiple of a big tile; slice afterwards.
    TL = cap
    return TL, _round_up(L, TL), True


def _choose_b_tile(B, F, TL, L_pad, elem_bytes):
    divs = [d for d in range(1, B + 1) if B % d == 0]
    fitting = [d for d in divs if d * F * TL * elem_bytes <= _OUT_BLOCK_BUDGET]
    TB = max(fitting) if fitting else 1
    # keep >= 4 grid steps (v7x has 2 TensorCores) unless it would make DMAs tiny
    l_steps = L_pad // TL
    while TB > 1 and (B // TB) * l_steps < 4:
        smaller = max(d for d in divs if d < TB)
        if smaller * F * TL * elem_bytes < _MIN_BLOCK_BYTES:
            break
        TB = smaller
    return TB


def position_embedding_sine(mask, *, num_pos_feats=256, temperature=10000,
                            normalize=False, scale=None, out_dtype=jnp.float32):
    """mask: (B, L), truthy = padded/invalid. Returns (B, num_pos_feats, L)."""
    if scale is not None and normalize is False:
        raise ValueError("normalize should be True if scale is passed")
    if scale is None:
        scale = 2 * math.pi

    B, L = mask.shape
    F = num_pos_feats

    # --- O(B*L) prologue in plain XLA: cumsum + optional normalization -------
    not_mask = jnp.logical_not(mask.astype(bool)).astype(jnp.float32)
    x_embed = jnp.cumsum(not_mask, axis=1)                  # (B, L)
    if normalize:
        eps = 1e-6
        x_embed = x_embed / (x_embed[:, -1:] + eps) * scale

    # --- host-side constants, fed as tiny (F, 1) VMEM inputs -----------------
    f = np.arange(F, dtype=np.float32)
    dim_t = np.float32(temperature) ** (2.0 * np.floor(f / 2.0) / np.float32(F))
    inv_dim_t = (1.0 / dim_t).astype(np.float32).reshape(F, 1)
    odd = (np.arange(F) % 2 == 1)
    exact_cos = not normalize          # unnormalized x can be large -> exact cos
    if exact_cos:
        aux = odd.astype(np.float32).reshape(F, 1)                       # cos mask
    else:
        aux = np.where(odd, np.float32(math.pi / 2.0),
                       np.float32(0.0)).astype(np.float32).reshape(F, 1)  # phase

    # --- tiling ---------------------------------------------------------------
    elem = jnp.dtype(out_dtype).itemsize
    TL, L_pad, needs_slice = _choose_l_tile(L, F, elem)
    TB = _choose_b_tile(B, F, TL, L_pad, elem)

    if L_pad != L:
        x_embed = jnp.pad(x_embed, ((0, 0), (0, L_pad - L)))
    x_embed = x_embed.reshape(B, 1, L_pad)

    grid = (B // TB, L_pad // TL)
    kernel = functools.partial(_pos_embed_sine_kernel, exact_cos=exact_cos)

    out = pl.pallas_call(
        kernel,
        out_shape=jax.ShapeDtypeStruct((B, F, L_pad), out_dtype),
        grid_spec=pltpu.PrefetchScalarGridSpec(
            num_scalar_prefetch=0,
            grid=grid,
            in_specs=[
                pl.BlockSpec((TB, 1, TL), lambda b, l: (b, 0, l)),
                pl.BlockSpec((F, 1), lambda b, l: (0, 0)),
                pl.BlockSpec((F, 1), lambda b, l: (0, 0)),
            ],
            out_specs=pl.BlockSpec((TB, F, TL), lambda b, l: (b, 0, l)),
        ),
        compiler_params=pltpu.CompilerParams(
            dimension_semantics=("parallel", "parallel"),
            vmem_limit_bytes=_VMEM_LIMIT),
        cost_estimate=pl.CostEstimate(
            flops=2 * B * F * L_pad,
            transcendentals=(2 if exact_cos else 1) * B * F * L_pad,
            bytes_accessed=B * F * L_pad * elem + B * L_pad * 4),
    )(x_embed, jnp.asarray(inv_dim_t), jnp.asarray(aux))

    if needs_slice:
        # TODO(synk): callers that tolerate a lane-padded (B, F, L_pad) output can
        # skip this slice (it is an extra full read+write of the result).
        out = out[:, :, :L]
    return out


def _reference(mask, num_pos_feats, temperature, normalize, scale):
    """Pure-JAX transcription of the PyTorch forward for verification."""
    B, L = mask.shape
    not_mask = (~mask).astype(jnp.float32)
    x_embed = jnp.cumsum(not_mask, axis=1)
    if normalize:
        eps = 1e-6
        x_embed = x_embed / (x_embed[:, -1:] + eps) * scale
    dim_t = jnp.arange(num_pos_feats, dtype=jnp.float32)
    dim_t = temperature ** (2 * jnp.floor(dim_t / 2) / num_pos_feats)
    pos_x = x_embed[:, :, None] / dim_t
    pos_x = jnp.stack((jnp.sin(pos_x[:, :, 0::2]),
                       jnp.cos(pos_x[:, :, 1::2])), axis=3).reshape(B, L, num_pos_feats)
    return jnp.transpose(pos_x, (0, 2, 1))


if __name__ == "__main__":
    B, L, F = 2, 16, 32
    temperature = 10000

    key = jax.random.PRNGKey(0)
    # padding mask: True means the position is padded/invalid
    mask = jax.random.bernoulli(key, p=0.25, shape=(B, L))

    # normalize=False (exact-cos path)
    pos = position_embedding_sine(mask, num_pos_feats=F, temperature=temperature,
                                  normalize=False)
    pos = jax.block_until_ready(pos)
    ref = _reference(mask, F, temperature, False, 2 * math.pi)
    assert pos.shape == (B, F, L)
    assert jnp.allclose(pos, ref, atol=1e-5, rtol=1e-5), (
        float(jnp.max(jnp.abs(pos - ref))))

    # normalize=True (single-sin phase-trick path)
    pos_n = position_embedding_sine(mask, num_pos_feats=F, temperature=temperature,
                                    normalize=True)
    pos_n = jax.block_until_ready(pos_n)
    ref_n = _reference(mask, F, temperature, True, 2 * math.pi)
    assert jnp.allclose(pos_n, ref_n, atol=1e-5, rtol=1e-5), (
        float(jnp.max(jnp.abs(pos_n - ref_n))))

    print("KERNEL_OK")
</pallas_src>

<mosaic_0001>
module attributes {stable_mosaic.version = 11 : i64} {
  func.func @_pos_embed_sine_kernel(%arg0: i32, %arg1: i32, %arg2: memref<2x1x16xf32, #tpu.memory_space<vmem>>, %arg3: memref<32x1xf32, #tpu.memory_space<vmem>>, %arg4: memref<32x1xf32, #tpu.memory_space<vmem>>, %arg5: memref<2x32x16xf32, #tpu.memory_space<vmem>>) attributes {dimension_semantics = [#tpu.dimension_semantics<parallel>, #tpu.dimension_semantics<parallel>], iteration_bounds = array<i64: 1, 1>, scalar_prefetch = 0 : i64, scratch_operands = 0 : i64, tpu.core_type = #tpu.core_type<tc>, window_params = [{transform_indices = @transform_0, window_bounds = array<i64: 2, 1, 16>}, {pipeline_mode = #tpu.pipeline_mode<synchronous>, transform_indices = @transform_1, window_bounds = array<i64: 32, 1>}, {pipeline_mode = #tpu.pipeline_mode<synchronous>, transform_indices = @transform_2, window_bounds = array<i64: 32, 1>}, {transform_indices = @transform_3, window_bounds = array<i64: 2, 32, 16>}]} {
    %c0 = arith.constant 0 : index
    %c0_0 = arith.constant 0 : index
    %c0_1 = arith.constant 0 : index
    %0 = vector.load %arg2[%c0, %c0_0, %c0_1] : memref<2x1x16xf32, #tpu.memory_space<vmem>>, vector<2x1x16xf32>
    %c0_2 = arith.constant 0 : index
    %c0_3 = arith.constant 0 : index
    %1 = vector.load %arg3[%c0_2, %c0_3] : memref<32x1xf32, #tpu.memory_space<vmem>>, vector<32x1xf32>
    %2 = vector.shape_cast %1 : vector<32x1xf32> to vector<1x32x1xf32>
    %3 = vector.broadcast %0 : vector<2x1x16xf32> to vector<2x32x16xf32>
    %4 = vector.broadcast %2 : vector<1x32x1xf32> to vector<2x32x16xf32>
    %5 = arith.mulf %3, %4 : vector<2x32x16xf32>
    %c0_4 = arith.constant 0 : index
    %c0_5 = arith.constant 0 : index
    %6 = vector.load %arg4[%c0_4, %c0_5] : memref<32x1xf32, #tpu.memory_space<vmem>>, vector<32x1xf32>
    %cst = arith.constant 5.000000e-01 : f32
    %7 = vector.broadcast %cst : f32 to vector<32x1xf32>
    %8 = arith.cmpf ogt, %6, %7 : vector<32x1xf32>
    %9 = math.cos %5 : vector<2x32x16xf32>
    %10 = math.sin %5 : vector<2x32x16xf32>
    %11 = vector.shape_cast %8 : vector<32x1xi1> to vector<1x32x1xi1>
    %12 = vector.broadcast %11 : vector<1x32x1xi1> to vector<2x32x16xi1>
    %13 = arith.select %12, %9, %10 : vector<2x32x16xi1>, vector<2x32x16xf32>
    %c0_6 = arith.constant 0 : index
    %c0_7 = arith.constant 0 : index
    %c0_8 = arith.constant 0 : index
    %14 = vector.load %arg5[%c0_6, %c0_7, %c0_8] : memref<2x32x16xf32, #tpu.memory_space<vmem>>, vector<2x32x16xf32>
    tpu.vector_store %arg5[%c0_6, %c0_7, %c0_8], %13 {strides = array<i32>} : memref<2x32x16xf32, #tpu.memory_space<vmem>>, vector<2x32x16xf32>,
    return
  }
  func.func @transform_0(%arg0: i32, %arg1: i32) -> (i32, i32, i32) {
    %c0_i32 = arith.constant 0 : i32
    %c0_i32_0 = arith.constant 0 : i32
    return %arg0, %c0_i32, %arg1 : i32, i32, i32
  }
  func.func @transform_1(%arg0: i32, %arg1: i32) -> (i32, i32) {
    %c0_i32 = arith.constant 0 : i32
    %c0_i32_0 = arith.constant 0 : i32
    %c0_i32_1 = arith.constant 0 : i32
    return %c0_i32, %c0_i32_0 : i32, i32
  }
  func.func @transform_2(%arg0: i32, %arg1: i32) -> (i32, i32) {
    %c0_i32 = arith.constant 0 : i32
    %c0_i32_0 = arith.constant 0 : i32
    %c0_i32_1 = arith.constant 0 : i32
    return %c0_i32, %c0_i32_0 : i32, i32
  }
  func.func @transform_3(%arg0: i32, %arg1: i32) -> (i32, i32, i32) {
    %c0_i32 = arith.constant 0 : i32
    %c0_i32_0 = arith.constant 0 : i32
    return %arg0, %c0_i32, %arg1 : i32, i32, i32
  }
}

</mosaic_0001>

<llo_original>
// kernel: tpu_custom_call.1
$region0: #{tpu_custom_call.1}
  #allocation0 [shape = 'u32[]', space=smem, size = 0x4, offset = 0x4, fixed_abs, tag = 'smem constant byte address 0x4 - core index']
  #allocation1 [shape = 'u32[144,128]{1,0:T(1,128)}', space=vmem, size = 0x12000, scoped, tag = 'internal scratch']
  %s0 = inlined_call_operand.vmem [shape: f32[2,1,16], index: 0, kind: input, shape index: {}]
  %s1 = inlined_call_operand.vmem [shape: f32[32,1], index: 1, kind: input, shape index: {}]
  %s2 = inlined_call_operand.vmem [shape: f32[32,1], index: 2, kind: input, shape index: {}]
  %s3 = inlined_call_operand.vmem [shape: f32[2,32,16], index: 3, kind: output, shape index: {}]
  %s4 = sld [smem:[#allocation0]]
  $region22: #{tpu_custom_call.1} parent=0
    _
  %s6 = ssub.s32 1, %s4
  %s7 = scalar_select 0, %s6, %s4
  // Predicated region
  $region2: #{tpu_custom_call.1} parent=0 // pred_check
    _
  $region3: #{tpu_custom_call.1} parent=0 // pred_check_branch
    %9 = sbr.rel (0) target = $region5
  $region4: #{tpu_custom_call.1} parent=0 // pred_region
    _
  $region5: #{tpu_custom_call.1} parent=0 // pred_fallthru
    _
  // Predicated region
  $region6: #{tpu_custom_call.1} parent=0 // pred_check
    _
  $region7: #{tpu_custom_call.1} parent=0 // pred_check_branch
    %11 = sbr.rel (0) target = $region9
  $region8: #{tpu_custom_call.1} parent=0 // pred_region
    _
  $region9: #{tpu_custom_call.1} parent=0 // pred_fallthru
    _
  // Predicated region
  $region10: #{tpu_custom_call.1} parent=0 // pred_check
    _
  $region11: #{tpu_custom_call.1} parent=0 // pred_check_branch
    %13 = sbr.rel (0) target = $region13
  $region12: #{tpu_custom_call.1} parent=0 // pred_region
    _
  $region13: #{tpu_custom_call.1} parent=0 // pred_fallthru
    _
  %v14 = vld [vmem:[%s0] sm:$0x1]
  %v15 = vld [vmem:[%s0 + $0x1] sm:$0x1]
  %v16 = vld [vmem:[%s1] sm:$0xff]
  %v17 = vld [vmem:[%s1 + $0x8] sm:$0xff]
  %v18 = vld [vmem:[%s1 + $0x10] sm:$0xff]
  %v19 = vld [vmem:[%s1 + $0x18] sm:$0xff]
  %v22 = vlaneseq
  %v23 = vshrl.u32 %v22, 7
  %v24 = vsub.s32 0, %v23
  %v25 = vrot.slane %v14, %v24
  %v26 = vlaneseq
  %v27 = vshrl.u32 %v26, 7
  %v28 = vsub.s32 0, %v27
  %v29 = vrot.slane %v15, %v28
  %33 = vset.pattern.permute.xlu0 0
  %34 = vperm.xlu0 %33, %v16
  %v35 = vpop.permute.xlu0 %34
  %38 = vset.pattern.permute.xlu0 0
  %39 = vperm.xlu0 %38, %v17
  %v40 = vpop.permute.xlu0 %39
  %43 = vset.pattern.permute.xlu0 0
  %44 = vperm.xlu0 %43, %v18
  %v45 = vpop.permute.xlu0 %44
  %48 = vset.pattern.permute.xlu0 0
  %49 = vperm.xlu0 %48, %v19
  %v50 = vpop.permute.xlu0 %49
  %v52 = vmul.f32 %v25, %v35
  %v53 = vmul.f32 %v25, %v40
  %v54 = vmul.f32 %v25, %v45
  %v55 = vmul.f32 %v25, %v50
  %v56 = vmul.f32 %v29, %v35
  %v57 = vmul.f32 %v29, %v40
  %v58 = vmul.f32 %v29, %v45
  %v59 = vmul.f32 %v29, %v50
  %v60 = vld [vmem:[%s2] sm:$0xff]
  %v61 = vld [vmem:[%s2 + $0x8] sm:$0xff]
  %v62 = vld [vmem:[%s2 + $0x10] sm:$0xff]
  %v63 = vld [vmem:[%s2 + $0x18] sm:$0xff]
  %vm64 = vcmp.gt.f32.partialorder %v60, 0.5
  %vm65 = vcmp.gt.f32.partialorder %v61, 0.5
  %vm66 = vcmp.gt.f32.partialorder %v62, 0.5
  %vm67 = vcmp.gt.f32.partialorder %v63, 0.5
  %v68 = vand.u32 2147483647, %v52
  %vm69 = vcmp.le.f32.partialorder %v68, 0.7853982
  %vm70 = vcmp.lt.s32.totalorder %v52, 0
  %v71 = vand.u32 %v52, 2139095040
  %v72 = vshrl.u32 %v71, 23
  %v73 = vsub.s32 %v72, 127
  %v74 = vand.u32 2147483647, %v52
  %v75 = vand.u32 %v74, 8388607
  %v76 = vor.u32 %v75, 8388608
  %v77 = vsub.s32 0, %v76
  %v78 = vadd.s32 %v73, 1
  %vm79 = vcmp.gt.s32.totalorder %v78, 0
  %v80 = vsel %vm79, %v78, 0
  %v81 = vshrl.u32 %v80, 5
  %v82 = vand.u32 %v80, 31
  %v83 = vsub.s32 32, %v82
  %v84 = vshrl.u32 683565275, %v83
  %v85 = vshll.u32 683565275, %v82
  %v86 = vshrl.u32 2475754826, %v83
  %v87 = vor.u32 %v85, %v86
  %v88 = vshll.u32 2475754826, %v82
  %v89 = vshrl.u32 2131351028, %v83
  %v90 = vor.u32 %v88, %v89
  %v91 = vshll.u32 2131351028, %v82
  %v92 = vshrl.u32 2102212464, %v83
  %v93 = vor.u32 %v91, %v92
  %v94 = vshll.u32 2102212464, %v82
  %v95 = vshrl.u32 920167782, %v83
  %v96 = vor.u32 %v94, %v95
  %v97 = vshll.u32 920167782, %v82
  %v98 = vshrl.u32 1326507024, %v83
  %v99 = vor.u32 %v97, %v98
  %vm100 = vcmp.lt.s32.totalorder %v81, 1
  %vm101 = vcmp.lt.s32.totalorder %v81, 2
  %vm102 = vcmp.lt.s32.totalorder %v81, 3
  %vm103 = vcmp.lt.s32.totalorder %v81, 4
  %v104 = vsel %vm100, %v84, %v87
  %v105 = vsel %vm103, %v93, 2102212464
  %v106 = vsel %vm102, %v90, %v105
  %v107 = vsel %vm101, %v104, %v106
  %v108 = vsel %vm100, %v87, %v90
  %v109 = vsel %vm103, %v96, 920167782
  %v110 = vsel %vm102, %v93, %v109
  %v111 = vsel %vm101, %v108, %v110
  %v112 = vsel %vm100, %v90, %v93
  %v113 = vsel %vm103, %v99, 1326507024
  %v114 = vsel %vm102, %v96, %v113
  %v115 = vsel %vm101, %v112, %v114
  %v116 = vshll.u32 %v76, 8
  %v117 = vmul.u32.u64.compose %v116, %v115
  %v118 = vextract.low.u32 %v117
  %v119 = vextract.high.u32 %v117
  %v120 = vmul.u32.u64.compose %v116, %v111
  %v121 = vextract.low.u32 %v120
  %v122 = vextract.high.u32 %v120
  %v123 = vmul.u32 %v116, %v107
  %v124 = vadd.s32 %v119, %v121
  %vm125 = vc.u32 %v119, %v121
  %v126 = vadd.s32 %v122, 1
  %v127 = vsel %vm125, %v126, %v122
  %v128 = vadd.s32 %v123, %v127
  %v129 = vadd.s32 %v128, 536870912
  %v130 = vshrl.u32 %v129, 30
  %v131 = vshll.u32 %v130, 30
  %v132 = vsub.s32 %v128, %v131
  %vm133 = vcmp.lt.s32.totalorder %v132, 0
  %v134 = vsub.s32 0, %v132
  %v135 = vsel %vm133, %v134, %v132
  %v136 = vclz %v135
  %v137 = vsub.s32 %v136, 2
  %vm138 = vcmp.gt.s32.totalorder 0, %v137
  %v139 = vsel %vm138, 0, %v137
  %v140 = vsub.s32 32, %v139
  %v141 = vshll.u32 %v132, %v139
  %v142 = vshrl.u32 %v124, %v140
  %v143 = vor.u32 %v141, %v142
  %v144 = vsub.s32 4294967266, %v139
  %v145 = vadd.s32 %v144, 127
  %v146 = vshll.u32 %v145, 23
  %v147 = vor.u32 4788187, %v146
  %v148 = vand.u32 2147483647, %v147
  %v150 = vcvt.s32.f32 %v143
  %v151 = vmul.f32 %v150, %v148
  %v152 = vxor.u32 %v151, 2147483648
  %v153 = vsel %vm70, %v152, %v151
  %v154 = vsub.s32 4, %v130
  %v155 = vsel %vm70, %v154, %v130
  %v156 = vsel %vm69, %v52, %v153
  %v157 = vsel %vm69, 0, %v155
  %v158 = vcosq.f32.pop %v156
  %v159 = vsinq.f32.pop %v156
  %vm160 = vweird.f32 %v52
  %v161 = vand.u32 %v157, 3
  %vm162 = vcmp.lt.s32.totalorder %v161, 2
  %vm163 = vcmp.eq.s32.totalorder %v161, 0
  %v164 = vxor.u32 %v159, 2147483648
  %v165 = vsel %vm163, %v158, %v164
  %vm166 = vcmp.eq.s32.totalorder %v161, 2
  %v167 = vxor.u32 %v158, 2147483648
  %v168 = vsel %vm166, %v167, %v159
  %v169 = vsel %vm162, %v165, %v168
  %v170 = vsel %vm160, nan, %v169
  %v171 = vand.u32 2147483647, %v53
  %vm172 = vcmp.le.f32.partialorder %v171, 0.7853982
  %vm173 = vcmp.lt.s32.totalorder %v53, 0
  %v174 = vand.u32 %v53, 2139095040
  %v175 = vshrl.u32 %v174, 23
  %v176 = vsub.s32 %v175, 127
  %v177 = vand.u32 2147483647, %v53
  %v178 = vand.u32 %v177, 8388607
  %v179 = vor.u32 %v178, 8388608
  %v180 = vsub.s32 0, %v179
  %v181 = vadd.s32 %v176, 1
  %vm182 = vcmp.gt.s32.totalorder %v181, 0
  %v183 = vsel %vm182, %v181, 0
  %v184 = vshrl.u32 %v183, 5
  %v185 = vand.u32 %v183, 31
  %v186 = vsub.s32 32, %v185
  %v187 = vshrl.u32 683565275, %v186
  %v188 = vshll.u32 683565275, %v185
  %v189 = vshrl.u32 2475754826, %v186
  %v190 = vor.u32 %v188, %v189
  %v191 = vshll.u32 2475754826, %v185
  %v192 = vshrl.u32 2131351028, %v186
  %v193 = vor.u32 %v191, %v192
  %v194 = vshll.u32 2131351028, %v185
  %v195 = vshrl.u32 2102212464, %v186
  %v196 = vor.u32 %v194, %v195
  %v197 = vshll.u32 2102212464, %v185
  %v198 = vshrl.u32 920167782, %v186
  %v199 = vor.u32 %v197, %v198
  %v200 = vshll.u32 920167782, %v185
  %v201 = vshrl.u32 1326507024, %v186
  %v202 = vor.u32 %v200, %v201
  %vm203 = vcmp.lt.s32.totalorder %v184, 1
  %vm204 = vcmp.lt.s32.totalorder %v184, 2
  %vm205 = vcmp.lt.s32.totalorder %v184, 3
  %vm206 = vcmp.lt.s32.totalorder %v184, 4
  %v207 = vsel %vm203, %v187, %v190
  %v208 = vsel %vm206, %v196, 2102212464
  %v209 = vsel %vm205, %v193, %v208
  %v210 = vsel %vm204, %v207, %v209
  %v211 = vsel %vm203, %v190, %v193
  %v212 = vsel %vm206, %v199, 920167782
  %v213 = vsel %vm205, %v196, %v212
  %v214 = vsel %vm204, %v211, %v213
  %v215 = vsel %vm203, %v193, %v196
  %v216 = vsel %vm206, %v202, 1326507024
  %v217 = vsel %vm205, %v199, %v216
  %v218 = vsel %vm204, %v215, %v217
  %v219 = vshll.u32 %v179, 8
  %v220 = vmul.u32.u64.compose %v219, %v218
  %v221 = vextract.low.u32 %v220
  %v222 = vextract.high.u32 %v220
  %v223 = vmul.u32.u64.compose %v219, %v214
  %v224 = vextract.low.u32 %v223
  %v225 = vextract.high.u32 %v223
  %v226 = vmul.u32 %v219, %v210
  %v227 = vadd.s32 %v222, %v224
  %vm228 = vc.u32 %v222, %v224
  %v229 = vadd.s32 %v225, 1
  %v230 = vsel %vm228, %v229, %v225
  %v231 = vadd.s32 %v226, %v230
  %v232 = vadd.s32 %v231, 536870912
  %v233 = vshrl.u32 %v232, 30
  %v234 = vshll.u32 %v233, 30
  %v235 = vsub.s32 %v231, %v234
  %vm236 = vcmp.lt.s32.totalorder %v235, 0
  %v237 = vsub.s32 0, %v235
  %v238 = vsel %vm236, %v237, %v235
  %v239 = vclz %v238
  %v240 = vsub.s32 %v239, 2
  %vm241 = vcmp.gt.s32.totalorder 0, %v240
  %v242 = vsel %vm241, 0, %v240
  %v243 = vsub.s32 32, %v242
  %v244 = vshll.u32 %v235, %v242
  %v245 = vshrl.u32 %v227, %v243
  %v246 = vor.u32 %v244, %v245
  %v247 = vsub.s32 4294967266, %v242
  %v248 = vadd.s32 %v247, 127
  %v249 = vshll.u32 %v248, 23
  %v250 = vor.u32 4788187, %v249
  %v251 = vand.u32 2147483647, %v250
  %v253 = vcvt.s32.f32 %v246
  %v254 = vmul.f32 %v253, %v251
  %v255 = vxor.u32 %v254, 2147483648
  %v256 = vsel %vm173, %v255, %v254
  %v257 = vsub.s32 4, %v233
  %v258 = vsel %vm173, %v257, %v233
  %v259 = vsel %vm172, %v53, %v256
  %v260 = vsel %vm172, 0, %v258
  %v261 = vcosq.f32.pop %v259
  %v262 = vsinq.f32.pop %v259
  %vm263 = vweird.f32 %v53
  %v264 = vand.u32 %v260, 3
  %vm265 = vcmp.lt.s32.totalorder %v264, 2
  %vm266 = vcmp.eq.s32.totalorder %v264, 0
  %v267 = vxor.u32 %v262, 2147483648
  %v268 = vsel %vm266, %v261, %v267
  %vm269 = vcmp.eq.s32.totalorder %v264, 2
  %v270 = vxor.u32 %v261, 2147483648
  %v271 = vsel %vm269, %v270, %v262
  %v272 = vsel %vm265, %v268, %v271
  %v273 = vsel %vm263, nan, %v272
  %v274 = vand.u32 2147483647, %v54
  %vm275 = vcmp.le.f32.partialorder %v274, 0.7853982
  %vm276 = vcmp.lt.s32.totalorder %v54, 0
  %v277 = vand.u32 %v54, 2139095040
  %v278 = vshrl.u32 %v277, 23
  %v279 = vsub.s32 %v278, 127
  %v280 = vand.u32 2147483647, %v54
  %v281 = vand.u32 %v280, 8388607
  %v282 = vor.u32 %v281, 8388608
  %v283 = vsub.s32 0, %v282
  %v284 = vadd.s32 %v279, 1
  %vm285 = vcmp.gt.s32.totalorder %v284, 0
  %v286 = vsel %vm285, %v284, 0
  %v287 = vshrl.u32 %v286, 5
  %v288 = vand.u32 %v286, 31
  %v289 = vsub.s32 32, %v288
  %v290 = vshrl.u32 683565275, %v289
  %v291 = vshll.u32 683565275, %v288
  %v292 = vshrl.u32 2475754826, %v289
  %v293 = vor.u32 %v291, %v292
  %v294 = vshll.u32 2475754826, %v288
  %v295 = vshrl.u32 2131351028, %v289
  %v296 = vor.u32 %v294, %v295
  %v297 = vshll.u32 2131351028, %v288
  %v298 = vshrl.u32 2102212464, %v289
  %v299 = vor.u32 %v297, %v298
  %v300 = vshll.u32 2102212464, %v288
  %v301 = vshrl.u32 920167782, %v289
  %v302 = vor.u32 %v300, %v301
  %v303 = vshll.u32 920167782, %v288
  %v304 = vshrl.u32 1326507024, %v289
  %v305 = vor.u32 %v303, %v304
  %vm306 = vcmp.lt.s32.totalorder %v287, 1
  %vm307 = vcmp.lt.s32.totalorder %v287, 2
  %vm308 = vcmp.lt.s32.totalorder %v287, 3
  %vm309 = vcmp.lt.s32.totalorder %v287, 4
  %v310 = vsel %vm306, %v290, %v293
  %v311 = vsel %vm309, %v299, 2102212464
  %v312 = vsel %vm308, %v296, %v311
  %v313 = vsel %vm307, %v310, %v312
  %v314 = vsel %vm306, %v293, %v296
  %v315 = vsel %vm309, %v302, 920167782
  %v316 = vsel %vm308, %v299, %v315
  %v317 = vsel %vm307, %v314, %v316
  %v318 = vsel %vm306, %v296, %v299
  %v319 = vsel %vm309, %v305, 1326507024
  %v320 = vsel %vm308, %v302, %v319
  %v321 = vsel %vm307, %v318, %v320
  %v322 = vshll.u32 %v282, 8
  %v323 = vmul.u32.u64.compose %v322, %v321
  %v324 = vextract.low.u32 %v323
  %v325 = vextract.high.u32 %v323
  %v326 = vmul.u32.u64.compose %v322, %v317
  %v327 = vextract.low.u32 %v326
  %v328 = vextract.high.u32 %v326
  %v329 = vmul.u32 %v322, %v313
  %v330 = vadd.s32 %v325, %v327
  %vm331 = vc.u32 %v325, %v327
  %v332 = vadd.s32 %v328, 1
  %v333 = vsel %vm331, %v332, %v328
  %v334 = vadd.s32 %v329, %v333
  %v335 = vadd.s32 %v334, 536870912
  %v336 = vshrl.u32 %v335, 30
  %v337 = vshll.u32 %v336, 30
  %v338 = vsub.s32 %v334, %v337
  %vm339 = vcmp.lt.s32.totalorder %v338, 0
  %v340 = vsub.s32 0, %v338
  %v341 = vsel %vm339, %v340, %v338
  %v342 = vclz %v341
  %v343 = vsub.s32 %v342, 2
  %vm344 = vcmp.gt.s32.totalorder 0, %v343
  %v345 = vsel %vm344, 0, %v343
  %v346 = vsub.s32 32, %v345
  %v347 = vshll.u32 %v338, %v345
  %v348 = vshrl.u32 %v330, %v346
  %v349 = vor.u32 %v347, %v348
  %v350 = vsub.s32 4294967266, %v345
  %v351 = vadd.s32 %v350, 127
  %v352 = vshll.u32 %v351, 23
  %v353 = vor.u32 4788187, %v352
  %v354 = vand.u32 2147483647, %v353
  %v356 = vcvt.s32.f32 %v349
  %v357 = vmul.f32 %v356, %v354
  %v358 = vxor.u32 %v357, 2147483648
  %v359 = vsel %vm276, %v358, %v357
  %v360 = vsub.s32 4, %v336
  %v361 = vsel %vm276, %v360, %v336
  %v362 = vsel %vm275, %v54, %v359
  %v363 = vsel %vm275, 0, %v361
  %v364 = vcosq.f32.pop %v362
  %v365 = vsinq.f32.pop %v362
  %vm366 = vweird.f32 %v54
  %v367 = vand.u32 %v363, 3
  %vm368 = vcmp.lt.s32.totalorder %v367, 2
  %vm369 = vcmp.eq.s32.totalorder %v367, 0
  %v370 = vxor.u32 %v365, 2147483648
  %v371 = vsel %vm369, %v364, %v370
  %vm372 = vcmp.eq.s32.totalorder %v367, 2
  %v373 = vxor.u32 %v364, 2147483648
  %v374 = vsel %vm372, %v373, %v365
  %v375 = vsel %vm368, %v371, %v374
  %v376 = vsel %vm366, nan, %v375
  %v377 = vand.u32 2147483647, %v55
  %vm378 = vcmp.le.f32.partialorder %v377, 0.7853982
  %vm379 = vcmp.lt.s32.totalorder %v55, 0
  %v380 = vand.u32 %v55, 2139095040
  %v381 = vshrl.u32 %v380, 23
  %v382 = vsub.s32 %v381, 127
  %v383 = vand.u32 2147483647, %v55
  %v384 = vand.u32 %v383, 8388607
  %v385 = vor.u32 %v384, 8388608
  %v386 = vsub.s32 0, %v385
  %v387 = vadd.s32 %v382, 1
  %vm388 = vcmp.gt.s32.totalorder %v387, 0
  %v389 = vsel %vm388, %v387, 0
  %v390 = vshrl.u32 %v389, 5
  %v391 = vand.u32 %v389, 31
  %v392 = vsub.s32 32, %v391
  %v393 = vshrl.u32 683565275, %v392
  %v394 = vshll.u32 683565275, %v391
  %v395 = vshrl.u32 2475754826, %v392
  %v396 = vor.u32 %v394, %v395
  %v397 = vshll.u32 2475754826, %v391
  %v398 = vshrl.u32 2131351028, %v392
  %v399 = vor.u32 %v397, %v398
  %v400 = vshll.u32 2131351028, %v391
  %v401 = vshrl.u32 2102212464, %v392
  %v402 = vor.u32 %v400, %v401
  %v403 = vshll.u32 2102212464, %v391
  %v404 = vshrl.u32 920167782, %v392
  %v405 = vor.u32 %v403, %v404
  %v406 = vshll.u32 920167782, %v391
  %v407 = vshrl.u32 1326507024, %v392
  %v408 = vor.u32 %v406, %v407
  %vm409 = vcmp.lt.s32.totalorder %v390, 1
  %vm410 = vcmp.lt.s32.totalorder %v390, 2
  %vm411 = vcmp.lt.s32.totalorder %v390, 3
  %vm412 = vcmp.lt.s32.totalorder %v390, 4
  %v413 = vsel %vm409, %v393, %v396
  %v414 = vsel %vm412, %v402, 2102212464
  %v415 = vsel %vm411, %v399, %v414
  %v416 = vsel %vm410, %v413, %v415
  %v417 = vsel %vm409, %v396, %v399
  %v418 = vsel %vm412, %v405, 920167782
  %v419 = vsel %vm411, %v402, %v418
  %v420 = vsel %vm410, %v417, %v419
  %v421 = vsel %vm409, %v399, %v402
  %v422 = vsel %vm412, %v408, 1326507024
  %v423 = vsel %vm411, %v405, %v422
  %v424 = vsel %vm410, %v421, %v423
  %v425 = vshll.u32 %v385, 8
  %v426 = vmul.u32.u64.compose %v425, %v424
  %v427 = vextract.low.u32 %v426
  %v428 = vextract.high.u32 %v426
  %v429 = vmul.u32.u64.compose %v425, %v420
  %v430 = vextract.low.u32 %v429
  %v431 = vextract.high.u32 %v429
  %v432 = vmul.u32 %v425, %v416
  %v433 = vadd.s32 %v428, %v430
  %vm434 = vc.u32 %v428, %v430
  %v435 = vadd.s32 %v431, 1
  %v436 = vsel %vm434, %v435, %v431
  %v437 = vadd.s32 %v432, %v436
  %v438 = vadd.s32 %v437, 536870912
  %v439 = vshrl.u32 %v438, 30
  %v440 = vshll.u32 %v439, 30
  %v441 = vsub.s32 %v437, %v440
  %vm442 = vcmp.lt.s32.totalorder %v441, 0
  %v443 = vsub.s32 0, %v441
  %v444 = vsel %vm442, %v443, %v441
  %v445 = vclz %v444
  %v446 = vsub.s32 %v445, 2
  %vm447 = vcmp.gt.s32.totalorder 0, %v446
  %v448 = vsel %vm447, 0, %v446
  %v449 = vsub.s32 32, %v448
  %v450 = vshll.u32 %v441, %v448
  %v451 = vshrl.u32 %v433, %v449
  %v452 = vor.u32 %v450, %v451
  %v453 = vsub.s32 4294967266, %v448
  %v454 = vadd.s32 %v453, 127
  %v455 = vshll.u32 %v454, 23
  %v456 = vor.u32 4788187, %v455
  %v457 = vand.u32 2147483647, %v456
  %v459 = vcvt.s32.f32 %v452
  %v460 = vmul.f32 %v459, %v457
  %v461 = vxor.u32 %v460, 2147483648
  %v462 = vsel %vm379, %v461, %v460
  %v463 = vsub.s32 4, %v439
  %v464 = vsel %vm379, %v463, %v439
  %v465 = vsel %vm378, %v55, %v462
  %v466 = vsel %vm378, 0, %v464
  %v467 = vcosq.f32.pop %v465
  %v468 = vsinq.f32.pop %v465
  %vm469 = vweird.f32 %v55
  %v470 = vand.u32 %v466, 3
  %vm471 = vcmp.lt.s32.totalorder %v470, 2
  %vm472 = vcmp.eq.s32.totalorder %v470, 0
  %v473 = vxor.u32 %v468, 2147483648
  %v474 = vsel %vm472, %v467, %v473
  %vm475 = vcmp.eq.s32.totalorder %v470, 2
  %v476 = vxor.u32 %v467, 2147483648
  %v477 = vsel %vm475, %v476, %v468
  %v478 = vsel %vm471, %v474, %v477
  %v479 = vsel %vm469, nan, %v478
  %v480 = vand.u32 2147483647, %v56
  %vm481 = vcmp.le.f32.partialorder %v480, 0.7853982
  %vm482 = vcmp.lt.s32.totalorder %v56, 0
  %v483 = vand.u32 %v56, 2139095040
  %v484 = vshrl.u32 %v483, 23
  %v485 = vsub.s32 %v484, 127
  %v486 = vand.u32 2147483647, %v56
  %v487 = vand.u32 %v486, 8388607
  %v488 = vor.u32 %v487, 8388608
  %v489 = vsub.s32 0, %v488
  %v490 = vadd.s32 %v485, 1
  %vm491 = vcmp.gt.s32.totalorder %v490, 0
  %v492 = vsel %vm491, %v490, 0
  %v493 = vshrl.u32 %v492, 5
  %v494 = vand.u32 %v492, 31
  %v495 = vsub.s32 32, %v494
  %v496 = vshrl.u32 683565275, %v495
  %v497 = vshll.u32 683565275, %v494
  %v498 = vshrl.u32 2475754826, %v495
  %v499 = vor.u32 %v497, %v498
  %v500 = vshll.u32 2475754826, %v494
  %v501 = vshrl.u32 2131351028, %v495
  %v502 = vor.u32 %v500, %v501
  %v503 = vshll.u32 2131351028, %v494
  %v504 = vshrl.u32 2102212464, %v495
  %v505 = vor.u32 %v503, %v504
  %v506 = vshll.u32 2102212464, %v494
  %v507 = vshrl.u32 920167782, %v495
  %v508 = vor.u32 %v506, %v507
  %v509 = vshll.u32 920167782, %v494
  %v510 = vshrl.u32 1326507024, %v495
  %v511 = vor.u32 %v509, %v510
  %vm512 = vcmp.lt.s32.totalorder %v493, 1
  %vm513 = vcmp.lt.s32.totalorder %v493, 2
  %vm514 = vcmp.lt.s32.totalorder %v493, 3
  %vm515 = vcmp.lt.s32.totalorder %v493, 4
  %v516 = vsel %vm512, %v496, %v499
  %v517 = vsel %vm515, %v505, 2102212464
  %v518 = vsel %vm514, %v502, %v517
  %v519 = vsel %vm513, %v516, %v518
  %v520 = vsel %vm512, %v499, %v502
  %v521 = vsel %vm515, %v508, 920167782
  %v522 = vsel %vm514, %v505, %v521
  %v523 = vsel %vm513, %v520, %v522
  %v524 = vsel %vm512, %v502, %v505
  %v525 = vsel %vm515, %v511, 1326507024
  %v526 = vsel %vm514, %v508, %v525
  %v527 = vsel %vm513, %v524, %v526
  %v528 = vshll.u32 %v488, 8
  %v529 = vmul.u32.u64.compose %v528, %v527
  %v530 = vextract.low.u32 %v529
  %v531 = vextract.high.u32 %v529
  %v532 = vmul.u32.u64.compose %v528, %v523
  %v533 = vextract.low.u32 %v532
  %v534 = vextract.high.u32 %v532
  %v535 = vmul.u32 %v528, %v519
  %v536 = vadd.s32 %v531, %v533
  %vm537 = vc.u32 %v531, %v533
  %v538 = vadd.s32 %v534, 1
  %v539 = vsel %vm537, %v538, %v534
  %v540 = vadd.s32 %v535, %v539
  %v541 = vadd.s32 %v540, 536870912
  %v542 = vshrl.u32 %v541, 30
  %v543 = vshll.u32 %v542, 30
  %v544 = vsub.s32 %v540, %v543
  %vm545 = vcmp.lt.s32.totalorder %v544, 0
  %v546 = vsub.s32 0, %v544
  %v547 = vsel %vm545, %v546, %v544
  %v548 = vclz %v547
  %v549 = vsub.s32 %v548, 2
  %vm550 = vcmp.gt.s32.totalorder 0, %v549
  %v551 = vsel %vm550, 0, %v549
  %v552 = vsub.s32 32, %v551
  %v553 = vshll.u32 %v544, %v551
  %v554 = vshrl.u32 %v536, %v552
  %v555 = vor.u32 %v553, %v554
  %v556 = vsub.s32 4294967266, %v551
  %v557 = vadd.s32 %v556, 127
  %v558 = vshll.u32 %v557, 23
  %v559 = vor.u32 4788187, %v558
  %v560 = vand.u32 2147483647, %v559
  %v562 = vcvt.s32.f32 %v555
  %v563 = vmul.f32 %v562, %v560
  %v564 = vxor.u32 %v563, 2147483648
  %v565 = vsel %vm482, %v564, %v563
  %v566 = vsub.s32 4, %v542
  %v567 = vsel %vm482, %v566, %v542
  %v568 = vsel %vm481, %v56, %v565
  %v569 = vsel %vm481, 0, %v567
  %v570 = vcosq.f32.pop %v568
  %v571 = vsinq.f32.pop %v568
  %vm572 = vweird.f32 %v56
  %v573 = vand.u32 %v569, 3
  %vm574 = vcmp.lt.s32.totalorder %v573, 2
  %vm575 = vcmp.eq.s32.totalorder %v573, 0
  %v576 = vxor.u32 %v571, 2147483648
  %v577 = vsel %vm575, %v570, %v576
  %vm578 = vcmp.eq.s32.totalorder %v573, 2
  %v579 = vxor.u32 %v570, 2147483648
  %v580 = vsel %vm578, %v579, %v571
  %v581 = vsel %vm574, %v577, %v580
  %v582 = vsel %vm572, nan, %v581
  %v583 = vand.u32 2147483647, %v57
  %vm584 = vcmp.le.f32.partialorder %v583, 0.7853982
  %vm585 = vcmp.lt.s32.totalorder %v57, 0
  %v586 = vand.u32 %v57, 2139095040
  %v587 = vshrl.u32 %v586, 23
  %v588 = vsub.s32 %v587, 127
  %v589 = vand.u32 2147483647, %v57
  %v590 = vand.u32 %v589, 8388607
  %v591 = vor.u32 %v590, 8388608
  %v592 = vsub.s32 0, %v591
  %v593 = vadd.s32 %v588, 1
  %vm594 = vcmp.gt.s32.totalorder %v593, 0
  %v595 = vsel %vm594, %v593, 0
  %v596 = vshrl.u32 %v595, 5
  %v597 = vand.u32 %v595, 31
  %v598 = vsub.s32 32, %v597
  %v599 = vshrl.u32 683565275, %v598
  %v600 = vshll.u32 683565275, %v597
  %v601 = vshrl.u32 2475754826, %v598
  %v602 = vor.u32 %v600, %v601
  %v603 = vshll.u32 2475754826, %v597
  %v604 = vshrl.u32 2131351028, %v598
  %v605 = vor.u32 %v603, %v604
  %v606 = vshll.u32 2131351028, %v597
  %v607 = vshrl.u32 2102212464, %v598
  %v608 = vor.u32 %v606, %v607
  %v609 = vshll.u32 2102212464, %v597
  %v610 = vshrl.u32 920167782, %v598
  %v611 = vor.u32 %v609, %v610
  %v612 = vshll.u32 920167782, %v597
  %v613 = vshrl.u32 1326507024, %v598
  %v614 = vor.u32 %v612, %v613
  %vm615 = vcmp.lt.s32.totalorder %v596, 1
  %vm616 = vcmp.lt.s32.totalorder %v596, 2
  %vm617 = vcmp.lt.s32.totalorder %v596, 3
  %vm618 = vcmp.lt.s32.totalorder %v596, 4
  %v619 = vsel %vm615, %v599, %v602
  %v620 = vsel %vm618, %v608, 2102212464
  %v621 = vsel %vm617, %v605, %v620
  %v622 = vsel %vm616, %v619, %v621
  %v623 = vsel %vm615, %v602, %v605
  %v624 = vsel %vm618, %v611, 920167782
  %v625 = vsel %vm617, %v608, %v624
  %v626 = vsel %vm616, %v623, %v625
  %v627 = vsel %vm615, %v605, %v608
  %v628 = vsel %vm618, %v614, 1326507024
  %v629 = vsel %vm617, %v611, %v628
  %v630 = vsel %vm616, %v627, %v629
  %v631 = vshll.u32 %v591, 8
  %v632 = vmul.u32.u64.compose %v631, %v630
  %v633 = vextract.low.u32 %v632
  %v634 = vextract.high.u32 %v632
  %v635 = vmul.u32.u64.compose %v631, %v626
  %v636 = vextract.low.u32 %v635
  %v637 = vextract.high.u32 %v635
  %v638 = vmul.u32 %v631, %v622
  %v639 = vadd.s32 %v634, %v636
  %vm640 = vc.u32 %v634, %v636
  %v641 = vadd.s32 %v637, 1
  %v642 = vsel %vm640, %v641, %v637
  %v643 = vadd.s32 %v638, %v642
  %v644 = vadd.s32 %v643, 536870912
  %v645 = vshrl.u32 %v644, 30
  %v646 = vshll.u32 %v645, 30
  %v647 = vsub.s32 %v643, %v646
  %vm648 = vcmp.lt.s32.totalorder %v647, 0
  %v649 = vsub.s32 0, %v647
  %v650 = vsel %vm648, %v649, %v647
  %v651 = vclz %v650
  %v652 = vsub.s32 %v651, 2
  %vm653 = vcmp.gt.s32.totalorder 0, %v652
  %v654 = vsel %vm653, 0, %v652
  %v655 = vsub.s32 32, %v654
  %v656 = vshll.u32 %v647, %v654
  %v657 = vshrl.u32 %v639, %v655
  %v658 = vor.u32 %v656, %v657
  %v659 = vsub.s32 4294967266, %v654
  %v660 = vadd.s32 %v659, 127
  %v661 = vshll.u32 %v660, 23
  %v662 = vor.u32 4788187, %v661
  %v663 = vand.u32 2147483647, %v662
  %v665 = vcvt.s32.f32 %v658
  %v666 = vmul.f32 %v665, %v663
  %v667 = vxor.u32 %v666, 2147483648
  %v668 = vsel %vm585, %v667, %v666
  %v669 = vsub.s32 4, %v645
  %v670 = vsel %vm585, %v669, %v645
  %v671 = vsel %vm584, %v57, %v668
  %v672 = vsel %vm584, 0, %v670
  %v673 = vcosq.f32.pop %v671
  %v674 = vsinq.f32.pop %v671
  %vm675 = vweird.f32 %v57
  %v676 = vand.u32 %v672, 3
  %vm677 = vcmp.lt.s32.totalorder %v676, 2
  %vm678 = vcmp.eq.s32.totalorder %v676, 0
  %v679 = vxor.u32 %v674, 2147483648
  %v680 = vsel %vm678, %v673, %v679
  %vm681 = vcmp.eq.s32.totalorder %v676, 2
  %v682 = vxor.u32 %v673, 2147483648
  %v683 = vsel %vm681, %v682, %v674
  %v684 = vsel %vm677, %v680, %v683
  %v685 = vsel %vm675, nan, %v684
  %v686 = vand.u32 2147483647, %v58
  %vm687 = vcmp.le.f32.partialorder %v686, 0.7853982
  %vm688 = vcmp.lt.s32.totalorder %v58, 0
  %v689 = vand.u32 %v58, 2139095040
  %v690 = vshrl.u32 %v689, 23
  %v691 = vsub.s32 %v690, 127
  %v692 = vand.u32 2147483647, %v58
  %v693 = vand.u32 %v692, 8388607
  %v694 = vor.u32 %v693, 8388608
  %v695 = vsub.s32 0, %v694
  %v696 = vadd.s32 %v691, 1
  %vm697 = vcmp.gt.s32.totalorder %v696, 0
  %v698 = vsel %vm697, %v696, 0
  %v699 = vshrl.u32 %v698, 5
  %v700 = vand.u32 %v698, 31
  %v701 = vsub.s32 32, %v700
  %v702 = vshrl.u32 683565275, %v701
  %v703 = vshll.u32 683565275, %v700
  %v704 = vshrl.u32 2475754826, %v701
  %v705 = vor.u32 %v703, %v704
  %v706 = vshll.u32 2475754826, %v700
  %v707 = vshrl.u32 2131351028, %v701
  %v708 = vor.u32 %v706, %v707
  %v709 = vshll.u32 2131351028, %v700
  %v710 = vshrl.u32 2102212464, %v701
  %v711 = vor.u32 %v709, %v710
  %v712 = vshll.u32 2102212464, %v700
  %v713 = vshrl.u32 920167782, %v701
  %v714 = vor.u32 %v712, %v713
  %v715 = vshll.u32 920167782, %v700
  %v716 = vshrl.u32 1326507024, %v701
  %v717 = vor.u32 %v715, %v716
  %vm718 = vcmp.lt.s32.totalorder %v699, 1
  %vm719 = vcmp.lt.s32.totalorder %v699, 2
  %vm720 = vcmp.lt.s32.totalorder %v699, 3
  %vm721 = vcmp.lt.s32.totalorder %v699, 4
  %v722 = vsel %vm718, %v702, %v705
  %v723 = vsel %vm721, %v711, 2102212464
  %v724 = vsel %vm720, %v708, %v723
  %v725 = vsel %vm719, %v722, %v724
  %v726 = vsel %vm718, %v705, %v708
  %v727 = vsel %vm721, %v714, 920167782
  %v728 = vsel %vm720, %v711, %v727
  %v729 = vsel %vm719, %v726, %v728
  %v730 = vsel %vm718, %v708, %v711
  %v731 = vsel %vm721, %v717, 1326507024
  %v732 = vsel %vm720, %v714, %v731
  %v733 = vsel %vm719, %v730, %v732
  %v734 = vshll.u32 %v694, 8
  %v735 = vmul.u32.u64.compose %v734, %v733
  %v736 = vextract.low.u32 %v735
  %v737 = vextract.high.u32 %v735
  %v738 = vmul.u32.u64.compose %v734, %v729
  %v739 = vextract.low.u32 %v738
  %v740 = vextract.high.u32 %v738
  %v741 = vmul.u32 %v734, %v725
  %v742 = vadd.s32 %v737, %v739
  %vm743 = vc.u32 %v737, %v739
  %v744 = vadd.s32 %v740, 1
  %v745 = vsel %vm743, %v744, %v740
  %v746 = vadd.s32 %v741, %v745
  %v747 = vadd.s32 %v746, 536870912
  %v748 = vshrl.u32 %v747, 30
  %v749 = vshll.u32 %v748, 30
  %v750 = vsub.s32 %v746, %v749
  %vm751 = vcmp.lt.s32.totalorder %v750, 0
  %v752 = vsub.s32 0, %v750
  %v753 = vsel %vm751, %v752, %v750
  %v754 = vclz %v753
  %v755 = vsub.s32 %v754, 2
  %vm756 = vcmp.gt.s32.totalorder 0, %v755
  %v757 = vsel %vm756, 0, %v755
  %v758 = vsub.s32 32, %v757
  %v759 = vshll.u32 %v750, %v757
  %v760 = vshrl.u32 %v742, %v758
  %v761 = vor.u32 %v759, %v760
  %v762 = vsub.s32 4294967266, %v757
  %v763 = vadd.s32 %v762, 127
  %v764 = vshll.u32 %v763, 23
  %v765 = vor.u32 4788187, %v764
  %v766 = vand.u32 2147483647, %v765
  %v768 = vcvt.s32.f32 %v761
  %v769 = vmul.f32 %v768, %v766
  %v770 = vxor.u32 %v769, 2147483648
  %v771 = vsel %vm688, %v770, %v769
  %v772 = vsub.s32 4, %v748
  %v773 = vsel %vm688, %v772, %v748
  %v774 = vsel %vm687, %v58, %v771
  %v775 = vsel %vm687, 0, %v773
  %v776 = vcosq.f32.pop %v774
  %v777 = vsinq.f32.pop %v774
  %vm778 = vweird.f32 %v58
  %v779 = vand.u32 %v775, 3
  %vm780 = vcmp.lt.s32.totalorder %v779, 2
  %vm781 = vcmp.eq.s32.totalorder %v779, 0
  %v782 = vxor.u32 %v777, 2147483648
  %v783 = vsel %vm781, %v776, %v782
  %vm784 = vcmp.eq.s32.totalorder %v779, 2
  %v785 = vxor.u32 %v776, 2147483648
  %v786 = vsel %vm784, %v785, %v777
  %v787 = vsel %vm780, %v783, %v786
  %v788 = vsel %vm778, nan, %v787
  %v789 = vand.u32 2147483647, %v59
  %vm790 = vcmp.le.f32.partialorder %v789, 0.7853982
  %vm791 = vcmp.lt.s32.totalorder %v59, 0
  %v792 = vand.u32 %v59, 2139095040
  %v793 = vshrl.u32 %v792, 23
  %v794 = vsub.s32 %v793, 127
  %v795 = vand.u32 2147483647, %v59
  %v796 = vand.u32 %v795, 8388607
  %v797 = vor.u32 %v796, 8388608
  %v798 = vsub.s32 0, %v797
  %v799 = vadd.s32 %v794, 1
  %vm800 = vcmp.gt.s32.totalorder %v799, 0
  %v801 = vsel %vm800, %v799, 0
  %v802 = vshrl.u32 %v801, 5
  %v803 = vand.u32 %v801, 31
  %v804 = vsub.s32 32, %v803
  %v805 = vshrl.u32 683565275, %v804
  %v806 = vshll.u32 683565275, %v803
  %v807 = vshrl.u32 2475754826, %v804
  %v808 = vor.u32 %v806, %v807
  %v809 = vshll.u32 2475754826, %v803
  %v810 = vshrl.u32 2131351028, %v804
  %v811 = vor.u32 %v809, %v810
  %v812 = vshll.u32 2131351028, %v803
  %v813 = vshrl.u32 2102212464, %v804
  %v814 = vor.u32 %v812, %v813
  %v815 = vshll.u32 2102212464, %v803
  %v816 = vshrl.u32 920167782, %v804
  %v817 = vor.u32 %v815, %v816
  %v818 = vshll.u32 920167782, %v803
  %v819 = vshrl.u32 1326507024, %v804
  %v820 = vor.u32 %v818, %v819
  %vm821 = vcmp.lt.s32.totalorder %v802, 1
  %vm822 = vcmp.lt.s32.totalorder %v802, 2
  %vm823 = vcmp.lt.s32.totalorder %v802, 3
  %vm824 = vcmp.lt.s32.totalorder %v802, 4
  %v825 = vsel %vm821, %v805, %v808
  %v826 = vsel %vm824, %v814, 2102212464
  %v827 = vsel %vm823, %v811, %v826
  %v828 = vsel %vm822, %v825, %v827
  %v829 = vsel %vm821, %v808, %v811
  %v830 = vsel %vm824, %v817, 920167782
  %v831 = vsel %vm823, %v814, %v830
  %v832 = vsel %vm822, %v829, %v831
  %v833 = vsel %vm821, %v811, %v814
  %v834 = vsel %vm824, %v820, 1326507024
  %v835 = vsel %vm823, %v817, %v834
  %v836 = vsel %vm822, %v833, %v835
  %v837 = vshll.u32 %v797, 8
  %v838 = vmul.u32.u64.compose %v837, %v836
  %v839 = vextract.low.u32 %v838
  %v840 = vextract.high.u32 %v838
  %v841 = vmul.u32.u64.compose %v837, %v832
  %v842 = vextract.low.u32 %v841
  %v843 = vextract.high.u32 %v841
  %v844 = vmul.u32 %v837, %v828
  %v845 = vadd.s32 %v840, %v842
  %vm846 = vc.u32 %v840, %v842
  %v847 = vadd.s32 %v843, 1
  %v848 = vsel %vm846, %v847, %v843
  %v849 = vadd.s32 %v844, %v848
  %v850 = vadd.s32 %v849, 536870912
  %v851 = vshrl.u32 %v850, 30
  %v852 = vshll.u32 %v851, 30
  %v853 = vsub.s32 %v849, %v852
  %vm854 = vcmp.lt.s32.totalorder %v853, 0
  %v855 = vsub.s32 0, %v853
  %v856 = vsel %vm854, %v855, %v853
  %v857 = vclz %v856
  %v858 = vsub.s32 %v857, 2
  %vm859 = vcmp.gt.s32.totalorder 0, %v858
  %v860 = vsel %vm859, 0, %v858
  %v861 = vsub.s32 32, %v860
  %v862 = vshll.u32 %v853, %v860
  %v863 = vshrl.u32 %v845, %v861
  %v864 = vor.u32 %v862, %v863
  %v865 = vsub.s32 4294967266, %v860
  %v866 = vadd.s32 %v865, 127
  %v867 = vshll.u32 %v866, 23
  %v868 = vor.u32 4788187, %v867
  %v869 = vand.u32 2147483647, %v868
  %v871 = vcvt.s32.f32 %v864
  %v872 = vmul.f32 %v871, %v869
  %v873 = vxor.u32 %v872, 2147483648
  %v874 = vsel %vm791, %v873, %v872
  %v875 = vsub.s32 4, %v851
  %v876 = vsel %vm791, %v875, %v851
  %v877 = vsel %vm790, %v59, %v874
  %v878 = vsel %vm790, 0, %v876
  %v879 = vcosq.f32.pop %v877
  %v880 = vsinq.f32.pop %v877
  %vm881 = vweird.f32 %v59
  %v882 = vand.u32 %v878, 3
  %vm883 = vcmp.lt.s32.totalorder %v882, 2
  %vm884 = vcmp.eq.s32.totalorder %v882, 0
  %v885 = vxor.u32 %v880, 2147483648
  %v886 = vsel %vm884, %v879, %v885
  %vm887 = vcmp.eq.s32.totalorder %v882, 2
  %v888 = vxor.u32 %v879, 2147483648
  %v889 = vsel %vm887, %v888, %v880
  %v890 = vsel %vm883, %v886, %v889
  %v891 = vsel %vm881, nan, %v890
  %v892 = vand.u32 2147483647, %v52
  %vm893 = vcmp.le.f32.partialorder %v892, 0.7853982
  %vm894 = vcmp.lt.s32.totalorder %v52, 0
  %v895 = vand.u32 %v52, 2139095040
  %v896 = vshrl.u32 %v895, 23
  %v897 = vsub.s32 %v896, 127
  %v898 = vand.u32 2147483647, %v52
  %v899 = vand.u32 %v898, 8388607
  %v900 = vor.u32 %v899, 8388608
  %v901 = vsub.s32 0, %v900
  %v902 = vadd.s32 %v897, 1
  %vm903 = vcmp.gt.s32.totalorder %v902, 0
  %v904 = vsel %vm903, %v902, 0
  %v905 = vshrl.u32 %v904, 5
  %v906 = vand.u32 %v904, 31
  %v907 = vsub.s32 32, %v906
  %v908 = vshrl.u32 683565275, %v907
  %v909 = vshll.u32 683565275, %v906
  %v910 = vshrl.u32 2475754826, %v907
  %v911 = vor.u32 %v909, %v910
  %v912 = vshll.u32 2475754826, %v906
  %v913 = vshrl.u32 2131351028, %v907
  %v914 = vor.u32 %v912, %v913
  %v915 = vshll.u32 2131351028, %v906
  %v916 = vshrl.u32 2102212464, %v907
  %v917 = vor.u32 %v915, %v916
  %v918 = vshll.u32 2102212464, %v906
  %v919 = vshrl.u32 920167782, %v907
  %v920 = vor.u32 %v918, %v919
  %v921 = vshll.u32 920167782, %v906
  %v922 = vshrl.u32 1326507024, %v907
  %v923 = vor.u32 %v921, %v922
  %vm924 = vcmp.lt.s32.totalorder %v905, 1
  %vm925 = vcmp.lt.s32.totalorder %v905, 2
  %vm926 = vcmp.lt.s32.totalorder %v905, 3
  %vm927 = vcmp.lt.s32.totalorder %v905, 4
  %v928 = vsel %vm924, %v908, %v911
  %v929 = vsel %vm927, %v917, 2102212464
  %v930 = vsel %vm926, %v914, %v929
  %v931 = vsel %vm925, %v928, %v930
  %v932 = vsel %vm924, %v911, %v914
  %v933 = vsel %vm927, %v920, 920167782
  %v934 = vsel %vm926, %v917, %v933
  %v935 = vsel %vm925, %v932, %v934
  %v936 = vsel %vm924, %v914, %v917
  %v937 = vsel %vm927, %v923, 1326507024
  %v938 = vsel %vm926, %v920, %v937
  %v939 = vsel %vm925, %v936, %v938
  %v940 = vshll.u32 %v900, 8
  %v941 = vmul.u32.u64.compose %v940, %v939
  %v942 = vextract.low.u32 %v941
  %v943 = vextract.high.u32 %v941
  %v944 = vmul.u32.u64.compose %v940, %v935
  %v945 = vextract.low.u32 %v944
  %v946 = vextract.high.u32 %v944
  %v947 = vmul.u32 %v940, %v931
  %v948 = vadd.s32 %v943, %v945
  %vm949 = vc.u32 %v943, %v945
  %v950 = vadd.s32 %v946, 1
  %v951 = vsel %vm949, %v950, %v946
  %v952 = vadd.s32 %v947, %v951
  %v953 = vadd.s32 %v952, 536870912
  %v954 = vshrl.u32 %v953, 30
  %v955 = vshll.u32 %v954, 30
  %v956 = vsub.s32 %v952, %v955
  %vm957 = vcmp.lt.s32.totalorder %v956, 0
  %v958 = vsub.s32 0, %v956
  %v959 = vsel %vm957, %v958, %v956
  %v960 = vclz %v959
  %v961 = vsub.s32 %v960, 2
  %vm962 = vcmp.gt.s32.totalorder 0, %v961
  %v963 = vsel %vm962, 0, %v961
  %v964 = vsub.s32 32, %v963
  %v965 = vshll.u32 %v956, %v963
  %v966 = vshrl.u32 %v948, %v964
  %v967 = vor.u32 %v965, %v966
  %v968 = vsub.s32 4294967266, %v963
  %v969 = vadd.s32 %v968, 127
  %v970 = vshll.u32 %v969, 23
  %v971 = vor.u32 4788187, %v970
  %v972 = vand.u32 2147483647, %v971
  %v974 = vcvt.s32.f32 %v967
  %v975 = vmul.f32 %v974, %v972
  %v976 = vxor.u32 %v975, 2147483648
  %v977 = vsel %vm894, %v976, %v975
  %v978 = vsub.s32 4, %v954
  %v979 = vsel %vm894, %v978, %v954
  %v980 = vsel %vm893, %v52, %v977
  %v981 = vsel %vm893, 0, %v979
  %v982 = vcosq.f32.pop %v980
  %v983 = vsinq.f32.pop %v980
  %vm984 = vweird.f32 %v52
  %v985 = vadd.s32 %v981, 3
  %v986 = vand.u32 %v985, 3
  %vm987 = vcmp.lt.s32.totalorder %v986, 2
  %vm988 = vcmp.eq.s32.totalorder %v986, 0
  %v989 = vxor.u32 %v983, 2147483648
  %v990 = vsel %vm988, %v982, %v989
  %vm991 = vcmp.eq.s32.totalorder %v986, 2
  %v992 = vxor.u32 %v982, 2147483648
  %v993 = vsel %vm991, %v992, %v983
  %v994 = vsel %vm987, %v990, %v993
  %v995 = vsel %vm984, nan, %v994
  %v996 = vand.u32 2147483647, %v53
  %vm997 = vcmp.le.f32.partialorder %v996, 0.7853982
  %vm998 = vcmp.lt.s32.totalorder %v53, 0
  %v999 = vand.u32 %v53, 2139095040
  %v1000 = vshrl.u32 %v999, 23
  %v1001 = vsub.s32 %v1000, 127
  %v1002 = vand.u32 2147483647, %v53
  %v1003 = vand.u32 %v1002, 8388607
  %v1004 = vor.u32 %v1003, 8388608
  %v1005 = vsub.s32 0, %v1004
  %v1006 = vadd.s32 %v1001, 1
  %vm1007 = vcmp.gt.s32.totalorder %v1006, 0
  %v1008 = vsel %vm1007, %v1006, 0
  %v1009 = vshrl.u32 %v1008, 5
  %v1010 = vand.u32 %v1008, 31
  %v1011 = vsub.s32 32, %v1010
  %v1012 = vshrl.u32 683565275, %v1011
  %v1013 = vshll.u32 683565275, %v1010
  %v1014 = vshrl.u32 2475754826, %v1011
  %v1015 = vor.u32 %v1013, %v1014
  %v1016 = vshll.u32 2475754826, %v1010
  %v1017 = vshrl.u32 2131351028, %v1011
  %v1018 = vor.u32 %v1016, %v1017
  %v1019 = vshll.u32 2131351028, %v1010
  %v1020 = vshrl.u32 2102212464, %v1011
  %v1021 = vor.u32 %v1019, %v1020
  %v1022 = vshll.u32 2102212464, %v1010
  %v1023 = vshrl.u32 920167782, %v1011
  %v1024 = vor.u32 %v1022, %v1023
  %v1025 = vshll.u32 920167782, %v1010
  %v1026 = vshrl.u32 1326507024, %v1011
  %v1027 = vor.u32 %v1025, %v1026
  %vm1028 = vcmp.lt.s32.totalorder %v1009, 1
  %vm1029 = vcmp.lt.s32.totalorder %v1009, 2
  %vm1030 = vcmp.lt.s32.totalorder %v1009, 3
  %vm1031 = vcmp.lt.s32.totalorder %v1009, 4
  %v1032 = vsel %vm1028, %v1012, %v1015
  %v1033 = vsel %vm1031, %v1021, 2102212464
  %v1034 = vsel %vm1030, %v1018, %v1033
  %v1035 = vsel %vm1029, %v1032, %v1034
  %v1036 = vsel %vm1028, %v1015, %v1018
  %v1037 = vsel %vm1031, %v1024, 920167782
  %v1038 = vsel %vm1030, %v1021, %v1037
  %v1039 = vsel %vm1029, %v1036, %v1038
  %v1040 = vsel %vm1028, %v1018, %v1021
  %v1041 = vsel %vm1031, %v1027, 1326507024
  %v1042 = vsel %vm1030, %v1024, %v1041
  %v1043 = vsel %vm1029, %v1040, %v1042
  %v1044 = vshll.u32 %v1004, 8
  %v1045 = vmul.u32.u64.compose %v1044, %v1043
  %v1046 = vextract.low.u32 %v1045
  %v1047 = vextract.high.u32 %v1045
  %v1048 = vmul.u32.u64.compose %v1044, %v1039
  %v1049 = vextract.low.u32 %v1048
  %v1050 = vextract.high.u32 %v1048
  %v1051 = vmul.u32 %v1044, %v1035
  %v1052 = vadd.s32 %v1047, %v1049
  %vm1053 = vc.u32 %v1047, %v1049
  %v1054 = vadd.s32 %v1050, 1
  %v1055 = vsel %vm1053, %v1054, %v1050
  %v1056 = vadd.s32 %v1051, %v1055
  %v1057 = vadd.s32 %v1056, 536870912
  %v1058 = vshrl.u32 %v1057, 30
  %v1059 = vshll.u32 %v1058, 30
  %v1060 = vsub.s32 %v1056, %v1059
  %vm1061 = vcmp.lt.s32.totalorder %v1060, 0
  %v1062 = vsub.s32 0, %v1060
  %v1063 = vsel %vm1061, %v1062, %v1060
  %v1064 = vclz %v1063
  %v1065 = vsub.s32 %v1064, 2
  %vm1066 = vcmp.gt.s32.totalorder 0, %v1065
  %v1067 = vsel %vm1066, 0, %v1065
  %v1068 = vsub.s32 32, %v1067
  %v1069 = vshll.u32 %v1060, %v1067
  %v1070 = vshrl.u32 %v1052, %v1068
  %v1071 = vor.u32 %v1069, %v1070
  %v1072 = vsub.s32 4294967266, %v1067
  %v1073 = vadd.s32 %v1072, 127
  %v1074 = vshll.u32 %v1073, 23
  %v1075 = vor.u32 4788187, %v1074
  %v1076 = vand.u32 2147483647, %v1075
  %v1078 = vcvt.s32.f32 %v1071
  %v1079 = vmul.f32 %v1078, %v1076
  %v1080 = vxor.u32 %v1079, 2147483648
  %v1081 = vsel %vm998, %v1080, %v1079
  %v1082 = vsub.s32 4, %v1058
  %v1083 = vsel %vm998, %v1082, %v1058
  %v1084 = vsel %vm997, %v53, %v1081
  %v1085 = vsel %vm997, 0, %v1083
  %v1086 = vcosq.f32.pop %v1084
  %v1087 = vsinq.f32.pop %v1084
  %vm1088 = vweird.f32 %v53
  %v1089 = vadd.s32 %v1085, 3
  %v1090 = vand.u32 %v1089, 3
  %vm1091 = vcmp.lt.s32.totalorder %v1090, 2
  %vm1092 = vcmp.eq.s32.totalorder %v1090, 0
  %v1093 = vxor.u32 %v1087, 2147483648
  %v1094 = vsel %vm1092, %v1086, %v1093
  %vm1095 = vcmp.eq.s32.totalorder %v1090, 2
  %v1096 = vxor.u32 %v1086, 2147483648
  %v1097 = vsel %vm1095, %v1096, %v1087
  %v1098 = vsel %vm1091, %v1094, %v1097
  %v1099 = vsel %vm1088, nan, %v1098
  %v1100 = vand.u32 2147483647, %v54
  %vm1101 = vcmp.le.f32.partialorder %v1100, 0.7853982
  %vm1102 = vcmp.lt.s32.totalorder %v54, 0
  %v1103 = vand.u32 %v54, 2139095040
  %v1104 = vshrl.u32 %v1103, 23
  %v1105 = vsub.s32 %v1104, 127
  %v1106 = vand.u32 2147483647, %v54
  %v1107 = vand.u32 %v1106, 8388607
  %v1108 = vor.u32 %v1107, 8388608
  %v1109 = vsub.s32 0, %v1108
  %v1110 = vadd.s32 %v1105, 1
  %vm1111 = vcmp.gt.s32.totalorder %v1110, 0
  %v1112 = vsel %vm1111, %v1110, 0
  %v1113 = vshrl.u32 %v1112, 5
  %v1114 = vand.u32 %v1112, 31
  %v1115 = vsub.s32 32, %v1114
  %v1116 = vshrl.u32 683565275, %v1115
  %v1117 = vshll.u32 683565275, %v1114
  %v1118 = vshrl.u32 2475754826, %v1115
  %v1119 = vor.u32 %v1117, %v1118
  %v1120 = vshll.u32 2475754826, %v1114
  %v1121 = vshrl.u32 2131351028, %v1115
  %v1122 = vor.u32 %v1120, %v1121
  %v1123 = vshll.u32 2131351028, %v1114
  %v1124 = vshrl.u32 2102212464, %v1115
  %v1125 = vor.u32 %v1123, %v1124
  %v1126 = vshll.u32 2102212464, %v1114
  %v1127 = vshrl.u32 920167782, %v1115
  %v1128 = vor.u32 %v1126, %v1127
  %v1129 = vshll.u32 920167782, %v1114
  %v1130 = vshrl.u32 1326507024, %v1115
  %v1131 = vor.u32 %v1129, %v1130
  %vm1132 = vcmp.lt.s32.totalorder %v1113, 1
  %vm1133 = vcmp.lt.s32.totalorder %v1113, 2
  %vm1134 = vcmp.lt.s32.totalorder %v1113, 3
  %vm1135 = vcmp.lt.s32.totalorder %v1113, 4
  %v1136 = vsel %vm1132, %v1116, %v1119
  %v1137 = vsel %vm1135, %v1125, 2102212464
  %v1138 = vsel %vm1134, %v1122, %v1137
  %v1139 = vsel %vm1133, %v1136, %v1138
  %v1140 = vsel %vm1132, %v1119, %v1122
  %v1141 = vsel %vm1135, %v1128, 920167782
  %v1142 = vsel %vm1134, %v1125, %v1141
  %v1143 = vsel %vm1133, %v1140, %v1142
  %v1144 = vsel %vm1132, %v1122, %v1125
  %v1145 = vsel %vm1135, %v1131, 1326507024
  %v1146 = vsel %vm1134, %v1128, %v1145
  %v1147 = vsel %vm1133, %v1144, %v1146
  %v1148 = vshll.u32 %v1108, 8
  %v1149 = vmul.u32.u64.compose %v1148, %v1147
  %v1150 = vextract.low.u32 %v1149
  %v1151 = vextract.high.u32 %v1149
  %v1152 = vmul.u32.u64.compose %v1148, %v1143
  %v1153 = vextract.low.u32 %v1152
  %v1154 = vextract.high.u32 %v1152
  %v1155 = vmul.u32 %v1148, %v1139
  %v1156 = vadd.s32 %v1151, %v1153
  %vm1157 = vc.u32 %v1151, %v1153
  %v1158 = vadd.s32 %v1154, 1
  %v1159 = vsel %vm1157, %v1158, %v1154
  %v1160 = vadd.s32 %v1155, %v1159
  %v1161 = vadd.s32 %v1160, 536870912
  %v1162 = vshrl.u32 %v1161, 30
  %v1163 = vshll.u32 %v1162, 30
  %v1164 = vsub.s32 %v1160, %v1163
  %vm1165 = vcmp.lt.s32.totalorder %v1164, 0
  %v1166 = vsub.s32 0, %v1164
  %v1167 = vsel %vm1165, %v1166, %v1164
  %v1168 = vclz %v1167
  %v1169 = vsub.s32 %v1168, 2
  %vm1170 = vcmp.gt.s32.totalorder 0, %v1169
  %v1171 = vsel %vm1170, 0, %v1169
  %v1172 = vsub.s32 32, %v1171
  %v1173 = vshll.u32 %v1164, %v1171
  %v1174 = vshrl.u32 %v1156, %v1172
  %v1175 = vor.u32 %v1173, %v1174
  %v1176 = vsub.s32 4294967266, %v1171
  %v1177 = vadd.s32 %v1176, 127
  %v1178 = vshll.u32 %v1177, 23
  %v1179 = vor.u32 4788187, %v1178
  %v1180 = vand.u32 2147483647, %v1179
  %v1182 = vcvt.s32.f32 %v1175
  %v1183 = vmul.f32 %v1182, %v1180
  %v1184 = vxor.u32 %v1183, 2147483648
  %v1185 = vsel %vm1102, %v1184, %v1183
  %v1186 = vsub.s32 4, %v1162
  %v1187 = vsel %vm1102, %v1186, %v1162
  %v1188 = vsel %vm1101, %v54, %v1185
  %v1189 = vsel %vm1101, 0, %v1187
  %v1190 = vcosq.f32.pop %v1188
  %v1191 = vsinq.f32.pop %v1188
  %vm1192 = vweird.f32 %v54
  %v1193 = vadd.s32 %v1189, 3
  %v1194 = vand.u32 %v1193, 3
  %vm1195 = vcmp.lt.s32.totalorder %v1194, 2
  %vm1196 = vcmp.eq.s32.totalorder %v1194, 0
  %v1197 = vxor.u32 %v1191, 2147483648
  %v1198 = vsel %vm1196, %v1190, %v1197
  %vm1199 = vcmp.eq.s32.totalorder %v1194, 2
  %v1200 = vxor.u32 %v1190, 2147483648
  %v1201 = vsel %vm1199, %v1200, %v1191
  %v1202 = vsel %vm1195, %v1198, %v1201
  %v1203 = vsel %vm1192, nan, %v1202
  %v1204 = vand.u32 2147483647, %v55
  %vm1205 = vcmp.le.f32.partialorder %v1204, 0.7853982
  %vm1206 = vcmp.lt.s32.totalorder %v55, 0
  %v1207 = vand.u32 %v55, 2139095040
  %v1208 = vshrl.u32 %v1207, 23
  %v1209 = vsub.s32 %v1208, 127
  %v1210 = vand.u32 2147483647, %v55
  %v1211 = vand.u32 %v1210, 8388607
  %v1212 = vor.u32 %v1211, 8388608
  %v1213 = vsub.s32 0, %v1212
  %v1214 = vadd.s32 %v1209, 1
  %vm1215 = vcmp.gt.s32.totalorder %v1214, 0
  %v1216 = vsel %vm1215, %v1214, 0
  %v1217 = vshrl.u32 %v1216, 5
  %v1218 = vand.u32 %v1216, 31
  %v1219 = vsub.s32 32, %v1218
  %v1220 = vshrl.u32 683565275, %v1219
  %v1221 = vshll.u32 683565275, %v1218
  %v1222 = vshrl.u32 2475754826, %v1219
  %v1223 = vor.u32 %v1221, %v1222
  %v1224 = vshll.u32 2475754826, %v1218
  %v1225 = vshrl.u32 2131351028, %v1219
  %v1226 = vor.u32 %v1224, %v1225
  %v1227 = vshll.u32 2131351028, %v1218
  %v1228 = vshrl.u32 2102212464, %v1219
  %v1229 = vor.u32 %v1227, %v1228
  %v1230 = vshll.u32 2102212464, %v1218
  %v1231 = vshrl.u32 920167782, %v1219
  %v1232 = vor.u32 %v1230, %v1231
  %v1233 = vshll.u32 920167782, %v1218
  %v1234 = vshrl.u32 1326507024, %v1219
  %v1235 = vor.u32 %v1233, %v1234
  %vm1236 = vcmp.lt.s32.totalorder %v1217, 1
  %vm1237 = vcmp.lt.s32.totalorder %v1217, 2
  %vm1238 = vcmp.lt.s32.totalorder %v1217, 3
  %vm1239 = vcmp.lt.s32.totalorder %v1217, 4
  %v1240 = vsel %vm1236, %v1220, %v1223
  %v1241 = vsel %vm1239, %v1229, 2102212464
  %v1242 = vsel %vm1238, %v1226, %v1241
  %v1243 = vsel %vm1237, %v1240, %v1242
  %v1244 = vsel %vm1236, %v1223, %v1226
  %v1245 = vsel %vm1239, %v1232, 920167782
  %v1246 = vsel %vm1238, %v1229, %v1245
  %v1247 = vsel %vm1237, %v1244, %v1246
  %v1248 = vsel %vm1236, %v1226, %v1229
  %v1249 = vsel %vm1239, %v1235, 1326507024
  %v1250 = vsel %vm1238, %v1232, %v1249
  %v1251 = vsel %vm1237, %v1248, %v1250
  %v1252 = vshll.u32 %v1212, 8
  %v1253 = vmul.u32.u64.compose %v1252, %v1251
  %v1254 = vextract.low.u32 %v1253
  %v1255 = vextract.high.u32 %v1253
  %v1256 = vmul.u32.u64.compose %v1252, %v1247
  %v1257 = vextract.low.u32 %v1256
  %v1258 = vextract.high.u32 %v1256
  %v1259 = vmul.u32 %v1252, %v1243
  %v1260 = vadd.s32 %v1255, %v1257
  %vm1261 = vc.u32 %v1255, %v1257
  %v1262 = vadd.s32 %v1258, 1
  %v1263 = vsel %vm1261, %v1262, %v1258
  %v1264 = vadd.s32 %v1259, %v1263
  %v1265 = vadd.s32 %v1264, 536870912
  %v1266 = vshrl.u32 %v1265, 30
  %v1267 = vshll.u32 %v1266, 30
  %v1268 = vsub.s32 %v1264, %v1267
  %vm1269 = vcmp.lt.s32.totalorder %v1268, 0
  %v1270 = vsub.s32 0, %v1268
  %v1271 = vsel %vm1269, %v1270, %v1268
  %v1272 = vclz %v1271
  %v1273 = vsub.s32 %v1272, 2
  %vm1274 = vcmp.gt.s32.totalorder 0, %v1273
  %v1275 = vsel %vm1274, 0, %v1273
  %v1276 = vsub.s32 32, %v1275
  %v1277 = vshll.u32 %v1268, %v1275
  %v1278 = vshrl.u32 %v1260, %v1276
  %v1279 = vor.u32 %v1277, %v1278
  %v1280 = vsub.s32 4294967266, %v1275
  %v1281 = vadd.s32 %v1280, 127
  %v1282 = vshll.u32 %v1281, 23
  %v1283 = vor.u32 4788187, %v1282
  %v1284 = vand.u32 2147483647, %v1283
  %v1286 = vcvt.s32.f32 %v1279
  %v1287 = vmul.f32 %v1286, %v1284
  %v1288 = vxor.u32 %v1287, 2147483648
  %v1289 = vsel %vm1206, %v1288, %v1287
  %v1290 = vsub.s32 4, %v1266
  %v1291 = vsel %vm1206, %v1290, %v1266
  %v1292 = vsel %vm1205, %v55, %v1289
  %v1293 = vsel %vm1205, 0, %v1291
  %v1294 = vcosq.f32.pop %v1292
  %v1295 = vsinq.f32.pop %v1292
  %vm1296 = vweird.f32 %v55
  %v1297 = vadd.s32 %v1293, 3
  %v1298 = vand.u32 %v1297, 3
  %vm1299 = vcmp.lt.s32.totalorder %v1298, 2
  %vm1300 = vcmp.eq.s32.totalorder %v1298, 0
  %v1301 = vxor.u32 %v1295, 2147483648
  %v1302 = vsel %vm1300, %v1294, %v1301
  %vm1303 = vcmp.eq.s32.totalorder %v1298, 2
  %v1304 = vxor.u32 %v1294, 2147483648
  %v1305 = vsel %vm1303, %v1304, %v1295
  %v1306 = vsel %vm1299, %v1302, %v1305
  %v1307 = vsel %vm1296, nan, %v1306
  %v1308 = vand.u32 2147483647, %v56
  %vm1309 = vcmp.le.f32.partialorder %v1308, 0.7853982
  %vm1310 = vcmp.lt.s32.totalorder %v56, 0
  %v1311 = vand.u32 %v56, 2139095040
  %v1312 = vshrl.u32 %v1311, 23
  %v1313 = vsub.s32 %v1312, 127
  %v1314 = vand.u32 2147483647, %v56
  %v1315 = vand.u32 %v1314, 8388607
  %v1316 = vor.u32 %v1315, 8388608
  %v1317 = vsub.s32 0, %v1316
  %v1318 = vadd.s32 %v1313, 1
  %vm1319 = vcmp.gt.s32.totalorder %v1318, 0
  %v1320 = vsel %vm1319, %v1318, 0
  %v1321 = vshrl.u32 %v1320, 5
  %v1322 = vand.u32 %v1320, 31
  %v1323 = vsub.s32 32, %v1322
  %v1324 = vshrl.u32 683565275, %v1323
  %v1325 = vshll.u32 683565275, %v1322
  %v1326 = vshrl.u32 2475754826, %v1323
  %v1327 = vor.u32 %v1325, %v1326
  %v1328 = vshll.u32 2475754826, %v1322
  %v1329 = vshrl.u32 2131351028, %v1323
  %v1330 = vor.u32 %v1328, %v1329
  %v1331 = vshll.u32 2131351028, %v1322
  %v1332 = vshrl.u32 2102212464, %v1323
  %v1333 = vor.u32 %v1331, %v1332
  %v1334 = vshll.u32 2102212464, %v1322
  %v1335 = vshrl.u32 920167782, %v1323
  %v1336 = vor.u32 %v1334, %v1335
  %v1337 = vshll.u32 920167782, %v1322
  %v1338 = vshrl.u32 1326507024, %v1323
  %v1339 = vor.u32 %v1337, %v1338
  %vm1340 = vcmp.lt.s32.totalorder %v1321, 1
  %vm1341 = vcmp.lt.s32.totalorder %v1321, 2
  %vm1342 = vcmp.lt.s32.totalorder %v1321, 3
  %vm1343 = vcmp.lt.s32.totalorder %v1321, 4
  %v1344 = vsel %vm1340, %v1324, %v1327
  %v1345 = vsel %vm1343, %v1333, 2102212464
  %v1346 = vsel %vm1342, %v1330, %v1345
  %v1347 = vsel %vm1341, %v1344, %v1346
  %v1348 = vsel %vm1340, %v1327, %v1330
  %v1349 = vsel %vm1343, %v1336, 920167782
  %v1350 = vsel %vm1342, %v1333, %v1349
  %v1351 = vsel %vm1341, %v1348, %v1350
  %v1352 = vsel %vm1340, %v1330, %v1333
  %v1353 = vsel %vm1343, %v1339, 1326507024
  %v1354 = vsel %vm1342, %v1336, %v1353
  %v1355 = vsel %vm1341, %v1352, %v1354
  %v1356 = vshll.u32 %v1316, 8
  %v1357 = vmul.u32.u64.compose %v1356, %v1355
  %v1358 = vextract.low.u32 %v1357
  %v1359 = vextract.high.u32 %v1357
  %v1360 = vmul.u32.u64.compose %v1356, %v1351
  %v1361 = vextract.low.u32 %v1360
  %v1362 = vextract.high.u32 %v1360
  %v1363 = vmul.u32 %v1356, %v1347
  %v1364 = vadd.s32 %v1359, %v1361
  %vm1365 = vc.u32 %v1359, %v1361
  %v1366 = vadd.s32 %v1362, 1
  %v1367 = vsel %vm1365, %v1366, %v1362
  %v1368 = vadd.s32 %v1363, %v1367
  %v1369 = vadd.s32 %v1368, 536870912
  %v1370 = vshrl.u32 %v1369, 30
  %v1371 = vshll.u32 %v1370, 30
  %v1372 = vsub.s32 %v1368, %v1371
  %vm1373 = vcmp.lt.s32.totalorder %v1372, 0
  %v1374 = vsub.s32 0, %v1372
  %v1375 = vsel %vm1373, %v1374, %v1372
  %v1376 = vclz %v1375
  %v1377 = vsub.s32 %v1376, 2
  %vm1378 = vcmp.gt.s32.totalorder 0, %v1377
  %v1379 = vsel %vm1378, 0, %v1377
  %v1380 = vsub.s32 32, %v1379
  %v1381 = vshll.u32 %v1372, %v1379
  %v1382 = vshrl.u32 %v1364, %v1380
  %v1383 = vor.u32 %v1381, %v1382
  %v1384 = vsub.s32 4294967266, %v1379
  %v1385 = vadd.s32 %v1384, 127
  %v1386 = vshll.u32 %v1385, 23
  %v1387 = vor.u32 4788187, %v1386
  %v1388 = vand.u32 2147483647, %v1387
  %v1390 = vcvt.s32.f32 %v1383
  %v1391 = vmul.f32 %v1390, %v1388
  %v1392 = vxor.u32 %v1391, 2147483648
  %v1393 = vsel %vm1310, %v1392, %v1391
  %v1394 = vsub.s32 4, %v1370
  %v1395 = vsel %vm1310, %v1394, %v1370
  %v1396 = vsel %vm1309, %v56, %v1393
  %v1397 = vsel %vm1309, 0, %v1395
  %v1398 = vcosq.f32.pop %v1396
  %v1399 = vsinq.f32.pop %v1396
  %vm1400 = vweird.f32 %v56
  %v1401 = vadd.s32 %v1397, 3
  %v1402 = vand.u32 %v1401, 3
  %vm1403 = vcmp.lt.s32.totalorder %v1402, 2
  %vm1404 = vcmp.eq.s32.totalorder %v1402, 0
  %v1405 = vxor.u32 %v1399, 2147483648
  %v1406 = vsel %vm1404, %v1398, %v1405
  %vm1407 = vcmp.eq.s32.totalorder %v1402, 2
  %v1408 = vxor.u32 %v1398, 2147483648
  %v1409 = vsel %vm1407, %v1408, %v1399
  %v1410 = vsel %vm1403, %v1406, %v1409
  %v1411 = vsel %vm1400, nan, %v1410
  %v1412 = vand.u32 2147483647, %v57
  %vm1413 = vcmp.le.f32.partialorder %v1412, 0.7853982
  %vm1414 = vcmp.lt.s32.totalorder %v57, 0
  %v1415 = vand.u32 %v57, 2139095040
  %v1416 = vshrl.u32 %v1415, 23
  %v1417 = vsub.s32 %v1416, 127
  %v1418 = vand.u32 2147483647, %v57
  %v1419 = vand.u32 %v1418, 8388607
  %v1420 = vor.u32 %v1419, 8388608
  %v1421 = vsub.s32 0, %v1420
  %v1422 = vadd.s32 %v1417, 1
  %vm1423 = vcmp.gt.s32.totalorder %v1422, 0
  %v1424 = vsel %vm1423, %v1422, 0
  %v1425 = vshrl.u32 %v1424, 5
  %v1426 = vand.u32 %v1424, 31
  %v1427 = vsub.s32 32, %v1426
  %v1428 = vshrl.u32 683565275, %v1427
  %v1429 = vshll.u32 683565275, %v1426
  %v1430 = vshrl.u32 2475754826, %v1427
  %v1431 = vor.u32 %v1429, %v1430
  %v1432 = vshll.u32 2475754826, %v1426
  %v1433 = vshrl.u32 2131351028, %v1427
  %v1434 = vor.u32 %v1432, %v1433
  %v1435 = vshll.u32 2131351028, %v1426
  %v1436 = vshrl.u32 2102212464, %v1427
  %v1437 = vor.u32 %v1435, %v1436
  %v1438 = vshll.u32 2102212464, %v1426
  %v1439 = vshrl.u32 920167782, %v1427
  %v1440 = vor.u32 %v1438, %v1439
  %v1441 = vshll.u32 920167782, %v1426
  %v1442 = vshrl.u32 1326507024, %v1427
  %v1443 = vor.u32 %v1441, %v1442
  %vm1444 = vcmp.lt.s32.totalorder %v1425, 1
  %vm1445 = vcmp.lt.s32.totalorder %v1425, 2
  %vm1446 = vcmp.lt.s32.totalorder %v1425, 3
  %vm1447 = vcmp.lt.s32.totalorder %v1425, 4
  %v1448 = vsel %vm1444, %v1428, %v1431
  %v1449 = vsel %vm1447, %v1437, 2102212464
  %v1450 = vsel %vm1446, %v1434, %v1449
  %v1451 = vsel %vm1445, %v1448, %v1450
  %v1452 = vsel %vm1444, %v1431, %v1434
  %v1453 = vsel %vm1447, %v1440, 920167782
  %v1454 = vsel %vm1446, %v1437, %v1453
  %v1455 = vsel %vm1445, %v1452, %v1454
  %v1456 = vsel %vm1444, %v1434, %v1437
  %v1457 = vsel %vm1447, %v1443, 1326507024
  %v1458 = vsel %vm1446, %v1440, %v1457
  %v1459 = vsel %vm1445, %v1456, %v1458
  %v1460 = vshll.u32 %v1420, 8
  %v1461 = vmul.u32.u64.compose %v1460, %v1459
  %v1462 = vextract.low.u32 %v1461
  %v1463 = vextract.high.u32 %v1461
  %v1464 = vmul.u32.u64.compose %v1460, %v1455
  %v1465 = vextract.low.u32 %v1464
  %v1466 = vextract.high.u32 %v1464
  %v1467 = vmul.u32 %v1460, %v1451
  %v1468 = vadd.s32 %v1463, %v1465
  %vm1469 = vc.u32 %v1463, %v1465
  %v1470 = vadd.s32 %v1466, 1
  %v1471 = vsel %vm1469, %v1470, %v1466
  %v1472 = vadd.s32 %v1467, %v1471
  %v1473 = vadd.s32 %v1472, 536870912
  %v1474 = vshrl.u32 %v1473, 30
  %v1475 = vshll.u32 %v1474, 30
  %v1476 = vsub.s32 %v1472, %v1475
  %vm1477 = vcmp.lt.s32.totalorder %v1476, 0
  %v1478 = vsub.s32 0, %v1476
  %v1479 = vsel %vm1477, %v1478, %v1476
  %v1480 = vclz %v1479
  %v1481 = vsub.s32 %v1480, 2
  %vm1482 = vcmp.gt.s32.totalorder 0, %v1481
  %v1483 = vsel %vm1482, 0, %v1481
  %v1484 = vsub.s32 32, %v1483
  %v1485 = vshll.u32 %v1476, %v1483
  %v1486 = vshrl.u32 %v1468, %v1484
  %v1487 = vor.u32 %v1485, %v1486
  %v1488 = vsub.s32 4294967266, %v1483
  %v1489 = vadd.s32 %v1488, 127
  %v1490 = vshll.u32 %v1489, 23
  %v1491 = vor.u32 4788187, %v1490
  %v1492 = vand.u32 2147483647, %v1491
  %v1494 = vcvt.s32.f32 %v1487
  %v1495 = vmul.f32 %v1494, %v1492
  %v1496 = vxor.u32 %v1495, 2147483648
  %v1497 = vsel %vm1414, %v1496, %v1495
  %v1498 = vsub.s32 4, %v1474
  %v1499 = vsel %vm1414, %v1498, %v1474
  %v1500 = vsel %vm1413, %v57, %v1497
  %v1501 = vsel %vm1413, 0, %v1499
  %v1502 = vcosq.f32.pop %v1500
  %v1503 = vsinq.f32.pop %v1500
  %vm1504 = vweird.f32 %v57
  %v1505 = vadd.s32 %v1501, 3
  %v1506 = vand.u32 %v1505, 3
  %vm1507 = vcmp.lt.s32.totalorder %v1506, 2
  %vm1508 = vcmp.eq.s32.totalorder %v1506, 0
  %v1509 = vxor.u32 %v1503, 2147483648
  %v1510 = vsel %vm1508, %v1502, %v1509
  %vm1511 = vcmp.eq.s32.totalorder %v1506, 2
  %v1512 = vxor.u32 %v1502, 2147483648
  %v1513 = vsel %vm1511, %v1512, %v1503
  %v1514 = vsel %vm1507, %v1510, %v1513
  %v1515 = vsel %vm1504, nan, %v1514
  %v1516 = vand.u32 2147483647, %v58
  %vm1517 = vcmp.le.f32.partialorder %v1516, 0.7853982
  %vm1518 = vcmp.lt.s32.totalorder %v58, 0
  %v1519 = vand.u32 %v58, 2139095040
  %v1520 = vshrl.u32 %v1519, 23
  %v1521 = vsub.s32 %v1520, 127
  %v1522 = vand.u32 2147483647, %v58
  %v1523 = vand.u32 %v1522, 8388607
  %v1524 = vor.u32 %v1523, 8388608
  %v1525 = vsub.s32 0, %v1524
  %v1526 = vadd.s32 %v1521, 1
  %vm1527 = vcmp.gt.s32.totalorder %v1526, 0
  %v1528 = vsel %vm1527, %v1526, 0
  %v1529 = vshrl.u32 %v1528, 5
  %v1530 = vand.u32 %v1528, 31
  %v1531 = vsub.s32 32, %v1530
  %v1532 = vshrl.u32 683565275, %v1531
  %v1533 = vshll.u32 683565275, %v1530
  %v1534 = vshrl.u32 2475754826, %v1531
  %v1535 = vor.u32 %v1533, %v1534
  %v1536 = vshll.u32 2475754826, %v1530
  %v1537 = vshrl.u32 2131351028, %v1531
  %v1538 = vor.u32 %v1536, %v1537
  %v1539 = vshll.u32 2131351028, %v1530
  %v1540 = vshrl.u32 2102212464, %v1531
  %v1541 = vor.u32 %v1539, %v1540
  %v1542 = vshll.u32 2102212464, %v1530
  %v1543 = vshrl.u32 920167782, %v1531
  %v1544 = vor.u32 %v1542, %v1543
  %v1545 = vshll.u32 920167782, %v1530
  %v1546 = vshrl.u32 1326507024, %v1531
  %v1547 = vor.u32 %v1545, %v1546
  %vm1548 = vcmp.lt.s32.totalorder %v1529, 1
  %vm1549 = vcmp.lt.s32.totalorder %v1529, 2
  %vm1550 = vcmp.lt.s32.totalorder %v1529, 3
  %vm1551 = vcmp.lt.s32.totalorder %v1529, 4
  %v1552 = vsel %vm1548, %v1532, %v1535
  %v1553 = vsel %vm1551, %v1541, 2102212464
  %v1554 = vsel %vm1550, %v1538, %v1553
  %v1555 = vsel %vm1549, %v1552, %v1554
  %v1556 = vsel %vm1548, %v1535, %v1538
  %v1557 = vsel %vm1551, %v1544, 920167782
  %v1558 = vsel %vm1550, %v1541, %v1557
  %v1559 = vsel %vm1549, %v1556, %v1558
  %v1560 = vsel %vm1548, %v1538, %v1541
  %v1561 = vsel %vm1551, %v1547, 1326507024
  %v1562 = vsel %vm1550, %v1544, %v1561
  %v1563 = vsel %vm1549, %v1560, %v1562
  %v1564 = vshll.u32 %v1524, 8
  %v1565 = vmul.u32.u64.compose %v1564, %v1563
  %v1566 = vextract.low.u32 %v1565
  %v1567 = vextract.high.u32 %v1565
  %v1568 = vmul.u32.u64.compose %v1564, %v1559
  %v1569 = vextract.low.u32 %v1568
  %v1570 = vextract.high.u32 %v1568
  %v1571 = vmul.u32 %v1564, %v1555
  %v1572 = vadd.s32 %v1567, %v1569
  %vm1573 = vc.u32 %v1567, %v1569
  %v1574 = vadd.s32 %v1570, 1
  %v1575 = vsel %vm1573, %v1574, %v1570
  %v1576 = vadd.s32 %v1571, %v1575
  %v1577 = vadd.s32 %v1576, 536870912
  %v1578 = vshrl.u32 %v1577, 30
  %v1579 = vshll.u32 %v1578, 30
  %v1580 = vsub.s32 %v1576, %v1579
  %vm1581 = vcmp.lt.s32.totalorder %v1580, 0
  %v1582 = vsub.s32 0, %v1580
  %v1583 = vsel %vm1581, %v1582, %v1580
  %v1584 = vclz %v1583
  %v1585 = vsub.s32 %v1584, 2
  %vm1586 = vcmp.gt.s32.totalorder 0, %v1585
  %v1587 = vsel %vm1586, 0, %v1585
  %v1588 = vsub.s32 32, %v1587
  %v1589 = vshll.u32 %v1580, %v1587
  %v1590 = vshrl.u32 %v1572, %v1588
  %v1591 = vor.u32 %v1589, %v1590
  %v1592 = vsub.s32 4294967266, %v1587
  %v1593 = vadd.s32 %v1592, 127
  %v1594 = vshll.u32 %v1593, 23
  %v1595 = vor.u32 4788187, %v1594
  %v1596 = vand.u32 2147483647, %v1595
  %v1598 = vcvt.s32.f32 %v1591
  %v1599 = vmul.f32 %v1598, %v1596
  %v1600 = vxor.u32 %v1599, 2147483648
  %v1601 = vsel %vm1518, %v1600, %v1599
  %v1602 = vsub.s32 4, %v1578
  %v1603 = vsel %vm1518, %v1602, %v1578
  %v1604 = vsel %vm1517, %v58, %v1601
  %v1605 = vsel %vm1517, 0, %v1603
  %v1606 = vcosq.f32.pop %v1604
  %v1607 = vsinq.f32.pop %v1604
  %vm1608 = vweird.f32 %v58
  %v1609 = vadd.s32 %v1605, 3
  %v1610 = vand.u32 %v1609, 3
  %vm1611 = vcmp.lt.s32.totalorder %v1610, 2
  %vm1612 = vcmp.eq.s32.totalorder %v1610, 0
  %v1613 = vxor.u32 %v1607, 2147483648
  %v1614 = vsel %vm1612, %v1606, %v1613
  %vm1615 = vcmp.eq.s32.totalorder %v1610, 2
  %v1616 = vxor.u32 %v1606, 2147483648
  %v1617 = vsel %vm1615, %v1616, %v1607
  %v1618 = vsel %vm1611, %v1614, %v1617
  %v1619 = vsel %vm1608, nan, %v1618
  %v1620 = vand.u32 2147483647, %v59
  %vm1621 = vcmp.le.f32.partialorder %v1620, 0.7853982
  %vm1622 = vcmp.lt.s32.totalorder %v59, 0
  %v1623 = vand.u32 %v59, 2139095040
  %v1624 = vshrl.u32 %v1623, 23
  %v1625 = vsub.s32 %v1624, 127
  %v1626 = vand.u32 2147483647, %v59
  %v1627 = vand.u32 %v1626, 8388607
  %v1628 = vor.u32 %v1627, 8388608
  %v1629 = vsub.s32 0, %v1628
  %v1630 = vadd.s32 %v1625, 1
  %vm1631 = vcmp.gt.s32.totalorder %v1630, 0
  %v1632 = vsel %vm1631, %v1630, 0
  %v1633 = vshrl.u32 %v1632, 5
  %v1634 = vand.u32 %v1632, 31
  %v1635 = vsub.s32 32, %v1634
  %v1636 = vshrl.u32 683565275, %v1635
  %v1637 = vshll.u32 683565275, %v1634
  %v1638 = vshrl.u32 2475754826, %v1635
  %v1639 = vor.u32 %v1637, %v1638
  %v1640 = vshll.u32 2475754826, %v1634
  %v1641 = vshrl.u32 2131351028, %v1635
  %v1642 = vor.u32 %v1640, %v1641
  %v1643 = vshll.u32 2131351028, %v1634
  %v1644 = vshrl.u32 2102212464, %v1635
  %v1645 = vor.u32 %v1643, %v1644
  %v1646 = vshll.u32 2102212464, %v1634
  %v1647 = vshrl.u32 920167782, %v1635
  %v1648 = vor.u32 %v1646, %v1647
  %v1649 = vshll.u32 920167782, %v1634
  %v1650 = vshrl.u32 1326507024, %v1635
  %v1651 = vor.u32 %v1649, %v1650
  %vm1652 = vcmp.lt.s32.totalorder %v1633, 1
  %vm1653 = vcmp.lt.s32.totalorder %v1633, 2
  %vm1654 = vcmp.lt.s32.totalorder %v1633, 3
  %vm1655 = vcmp.lt.s32.totalorder %v1633, 4
  %v1656 = vsel %vm1652, %v1636, %v1639
  %v1657 = vsel %vm1655, %v1645, 2102212464
  %v1658 = vsel %vm1654, %v1642, %v1657
  %v1659 = vsel %vm1653, %v1656, %v1658
  %v1660 = vsel %vm1652, %v1639, %v1642
  %v1661 = vsel %vm1655, %v1648, 920167782
  %v1662 = vsel %vm1654, %v1645, %v1661
  %v1663 = vsel %vm1653, %v1660, %v1662
  %v1664 = vsel %vm1652, %v1642, %v1645
  %v1665 = vsel %vm1655, %v1651, 1326507024
  %v1666 = vsel %vm1654, %v1648, %v1665
  %v1667 = vsel %vm1653, %v1664, %v1666
  %v1668 = vshll.u32 %v1628, 8
  %v1669 = vmul.u32.u64.compose %v1668, %v1667
  %v1670 = vextract.low.u32 %v1669
  %v1671 = vextract.high.u32 %v1669
  %v1672 = vmul.u32.u64.compose %v1668, %v1663
  %v1673 = vextract.low.u32 %v1672
  %v1674 = vextract.high.u32 %v1672
  %v1675 = vmul.u32 %v1668, %v1659
  %v1676 = vadd.s32 %v1671, %v1673
  %vm1677 = vc.u32 %v1671, %v1673
  %v1678 = vadd.s32 %v1674, 1
  %v1679 = vsel %vm1677, %v1678, %v1674
  %v1680 = vadd.s32 %v1675, %v1679
  %v1681 = vadd.s32 %v1680, 536870912
  %v1682 = vshrl.u32 %v1681, 30
  %v1683 = vshll.u32 %v1682, 30
  %v1684 = vsub.s32 %v1680, %v1683
  %vm1685 = vcmp.lt.s32.totalorder %v1684, 0
  %v1686 = vsub.s32 0, %v1684
  %v1687 = vsel %vm1685, %v1686, %v1684
  %v1688 = vclz %v1687
  %v1689 = vsub.s32 %v1688, 2
  %vm1690 = vcmp.gt.s32.totalorder 0, %v1689
  %v1691 = vsel %vm1690, 0, %v1689
  %v1692 = vsub.s32 32, %v1691
  %v1693 = vshll.u32 %v1684, %v1691
  %v1694 = vshrl.u32 %v1676, %v1692
  %v1695 = vor.u32 %v1693, %v1694
  %v1696 = vsub.s32 4294967266, %v1691
  %v1697 = vadd.s32 %v1696, 127
  %v1698 = vshll.u32 %v1697, 23
  %v1699 = vor.u32 4788187, %v1698
  %v1700 = vand.u32 2147483647, %v1699
  %v1702 = vcvt.s32.f32 %v1695
  %v1703 = vmul.f32 %v1702, %v1700
  %v1704 = vxor.u32 %v1703, 2147483648
  %v1705 = vsel %vm1622, %v1704, %v1703
  %v1706 = vsub.s32 4, %v1682
  %v1707 = vsel %vm1622, %v1706, %v1682
  %v1708 = vsel %vm1621, %v59, %v1705
  %v1709 = vsel %vm1621, 0, %v1707
  %v1710 = vcosq.f32.pop %v1708
  %v1711 = vsinq.f32.pop %v1708
  %vm1712 = vweird.f32 %v59
  %v1713 = vadd.s32 %v1709, 3
  %v1714 = vand.u32 %v1713, 3
  %vm1715 = vcmp.lt.s32.totalorder %v1714, 2
  %vm1716 = vcmp.eq.s32.totalorder %v1714, 0
  %v1717 = vxor.u32 %v1711, 2147483648
  %v1718 = vsel %vm1716, %v1710, %v1717
  %vm1719 = vcmp.eq.s32.totalorder %v1714, 2
  %v1720 = vxor.u32 %v1710, 2147483648
  %v1721 = vsel %vm1719, %v1720, %v1711
  %v1722 = vsel %vm1715, %v1718, %v1721
  %v1723 = vsel %vm1712, nan, %v1722
  %v1724 = vsel %vm64, 1, 0
  %v1725 = vsel %vm65, 1, 0
  %v1726 = vsel %vm66, 1, 0
  %v1727 = vsel %vm67, 1, 0
  %1728 = vset.pattern.permute.xlu0 0
  %1729 = vperm.xlu0 %1728, %v1724
  %v1730 = vpop.permute.xlu0 %1729
  %1731 = vset.pattern.permute.xlu0 0
  %1732 = vperm.xlu0 %1731, %v1725
  %v1733 = vpop.permute.xlu0 %1732
  %1734 = vset.pattern.permute.xlu0 0
  %1735 = vperm.xlu0 %1734, %v1726
  %v1736 = vpop.permute.xlu0 %1735
  %1737 = vset.pattern.permute.xlu0 0
  %1738 = vperm.xlu0 %1737, %v1727
  %v1739 = vpop.permute.xlu0 %1738
  %vm1740 = vcmp.eq.s32.totalorder %v1730, 1
  %vm1741 = vcmp.eq.s32.totalorder %v1733, 1
  %vm1742 = vcmp.eq.s32.totalorder %v1736, 1
  %vm1743 = vcmp.eq.s32.totalorder %v1739, 1
  %v1744 = vsel %vm1740, %v170, %v995
  %v1745 = vsel %vm1741, %v273, %v1099
  %v1746 = vsel %vm1742, %v376, %v1203
  %v1747 = vsel %vm1743, %v479, %v1307
  %v1748 = vsel %vm1740, %v582, %v1411
  %v1749 = vsel %vm1741, %v685, %v1515
  %v1750 = vsel %vm1742, %v788, %v1619
  %v1751 = vsel %vm1743, %v891, %v1723
  %vm1752 = vcmask 130048
  %1753 = vst.msk [vmem:[%s3] sm:$0xff] %vm1752, %v1744
  %1754 = vst.msk [vmem:[%s3 + $0x8] sm:$0xff] %vm1752, %v1745
  %1755 = vst.msk [vmem:[%s3 + $0x10] sm:$0xff] %vm1752, %v1746
  %1756 = vst.msk [vmem:[%s3 + $0x18] sm:$0xff] %vm1752, %v1747
  %1757 = vst.msk [vmem:[%s3 + $0x20] sm:$0xff] %vm1752, %v1748
  %1758 = vst.msk [vmem:[%s3 + $0x28] sm:$0xff] %vm1752, %v1749
  %1759 = vst.msk [vmem:[%s3 + $0x30] sm:$0xff] %vm1752, %v1750
  %1760 = vst.msk [vmem:[%s3 + $0x38] sm:$0xff] %vm1752, %v1751
  // Predicated region
  $region14: #{tpu_custom_call.1} parent=0 // pred_check
    _
  $region15: #{tpu_custom_call.1} parent=0 // pred_check_branch
    %1762 = sbr.rel (0) target = $region17
  $region16: #{tpu_custom_call.1} parent=0 // pred_region
    _
  $region17: #{tpu_custom_call.1} parent=0 // pred_fallthru
    _
  // Predicated region
  $region18: #{tpu_custom_call.1} parent=0 // pred_check
    _
  $region19: #{tpu_custom_call.1} parent=0 // pred_check_branch
    %1764 = sbr.rel (0) target = $region21
  $region20: #{tpu_custom_call.1} parent=0 // pred_region
    _
  $region21: #{tpu_custom_call.1} parent=0 // pred_fallthru
    _

</llo_original>
